<compile_context>
chip_gen: v5e
topology: v5e:2x2
jax: 0.10.0
libtpu: 0.0.40
codegen_flags: <defaults>
</compile_context>

<pallas_src>
from math import log, pi

import jax
import jax.numpy as jnp
import numpy as np
from jax.experimental import pallas as pl
from jax.experimental.pallas import tpu as pltpu

# ---------------- problem sizes (small, consistent with the module) ----------
B, C, H, W = 2, 4, 16, 16          # x: [2, 4, 16, 16]  (NCHW)
D = C * H * W                      # 1024, flattened feature dim
EMB = 128                          # time / label embedding dim
HID = 128                          # hidden dim of the MLP network
NUM_CLASSES = 10
SIGMA = 25.0
LOG_SIGMA = log(SIGMA)
TWO_PI = 2.0 * pi


# ----------------------------- Pallas kernel ---------------------------------
def cond_score_kernel(label_ref,                       # SMEM [B] int32 (scalar prefetch)
                      x_ref, t_ref, timew_ref, ltab_ref,
                      w1_ref, wc_ref, b1_ref, w2_ref, b2_ref,
                      o_ref):
    # x_ref:     [B, D]            f32   flattened perturbed image
    # t_ref:     [B, 1]            f32   diffusion time
    # timew_ref: [1, EMB]          f32   Gaussian-Fourier frequencies
    # ltab_ref:  [NUM_CLASSES,EMB] f32   label embedding table (whole, VMEM)
    # w1_ref:    [D, HID]          bf16
    # wc_ref:    [EMB, HID]        bf16
    # b1_ref:    [1, HID]          f32
    # w2_ref:    [HID, D]          bf16
    # b2_ref:    [1, D]            f32
    # o_ref:     [B, D]            f32
    t = t_ref[...]                                               # [B, 1]

    # --- conditioning: Gaussian-Fourier time embedding ---
    temb = jnp.sin(TWO_PI * t * timew_ref[...])                  # [B, EMB]

    # --- label embedding gather: table in VMEM, labels in SMEM ---
    tab = ltab_ref[...]                                          # [NC, EMB]
    cls = jax.lax.broadcasted_iota(jnp.int32, (NUM_CLASSES, 1), 0)
    rows = []
    for b in range(B):                                           # B == 2
        onehot = (cls == label_ref[b]).astype(jnp.float32)       # [NC, 1]
        rows.append(jnp.sum(tab * onehot, axis=0, keepdims=True))  # [1, EMB]
    lemb = jnp.concatenate(rows, axis=0)                         # [B, EMB]

    cond = temb + lemb                                           # [B, EMB]

    # --- first layer: two MXU dots (bf16 operands, f32 accumulation) ---
    h = jnp.dot(x_ref[...].astype(jnp.bfloat16), w1_ref[...],
                preferred_element_type=jnp.float32)              # [B, HID]
    h = h + jnp.dot(cond.astype(jnp.bfloat16), wc_ref[...],
                    preferred_element_type=jnp.float32)
    h = h + b1_ref[...]
    h = h * jax.nn.sigmoid(h)                                    # SiLU

    # --- second layer ---
    out = (jnp.dot(h.astype(jnp.bfloat16), w2_ref[...],
                   preferred_element_type=jnp.float32)
           + b2_ref[...])                                        # [B, D]

    # --- ScoreModel scaling:  / stddev(t)[:, None]  (single EUP rsqrt) ---
    inv_std = jax.lax.rsqrt(
        (jnp.exp(2.0 * t * LOG_SIGMA) - 1.0) / (2.0 * LOG_SIGMA))
    o_ref[...] = out * inv_std


# ------------------------------ wrapper ---------------------------------------
def conditional_score_forward(x_nchw, t, label, params):
    """x_nchw: [B,C,H,W] f32, t: [B] f32, label: [B] int32."""
    # Only free bitcast reshapes remain in the wrapper; padding/gather are
    # folded into the kernel.
    x_flat = x_nchw.reshape(B, D).astype(jnp.float32)
    t2d = t.reshape(B, 1).astype(jnp.float32)
    label = label.astype(jnp.int32)

    weight_bytes = (D * HID + EMB * HID + HID * D) * 2 + (HID + D) * 4
    act_bytes = (B * D * 4            # x in
                 + B * D * 4          # out
                 + B * 4 + EMB * 4 + NUM_CLASSES * EMB * 4 + B * 4)
    cost = pl.CostEstimate(
        flops=2 * B * D * HID + 2 * B * EMB * HID + 2 * B * HID * D,
        transcendentals=B * (EMB + HID + 2),
        bytes_accessed=weight_bytes + act_bytes)

    fixed = lambda shape: pl.BlockSpec(shape, lambda i, lab: (0,) * len(shape))

    out_flat = pl.pallas_call(
        cond_score_kernel,
        out_shape=jax.ShapeDtypeStruct((B, D), jnp.float32),
        grid_spec=pltpu.PrefetchScalarGridSpec(
            num_scalar_prefetch=1,              # label -> SMEM
            grid=(1,),
            in_specs=[
                fixed((B, D)),                  # x_flat
                fixed((B, 1)),                  # t
                fixed((1, EMB)),                # time_w
                fixed((NUM_CLASSES, EMB)),      # label embedding table
                fixed((D, HID)),                # W1   bf16
                fixed((EMB, HID)),              # Wc   bf16
                fixed((1, HID)),                # b1
                fixed((HID, D)),                # W2   bf16
                fixed((1, D)),                  # b2
            ],
            out_specs=pl.BlockSpec((B, D), lambda i, lab: (0, 0)),
        ),
        compiler_params=pltpu.CompilerParams(
            dimension_semantics=("arbitrary",)),
        cost_estimate=cost,
    )(label, x_flat, t2d,
      params["time_w"], params["label_embed"],
      params["w1"], params["wc"], params["b1"], params["w2"], params["b2"])

    return out_flat.reshape(B, C, H, W)


# --------------------------- pure-JAX reference --------------------------------
def reference_forward(x_nchw, t, label, params):
    x_flat = x_nchw.reshape(B, D)
    temb = jnp.sin(TWO_PI * t[:, None] * params["time_w"])
    lemb = jnp.take(params["label_embed"], label, axis=0)
    cond = temb + lemb
    h = (jnp.dot(x_flat.astype(jnp.bfloat16), params["w1"],
                 preferred_element_type=jnp.float32)
         + jnp.dot(cond.astype(jnp.bfloat16), params["wc"],
                   preferred_element_type=jnp.float32)
         + params["b1"])
    h = h * jax.nn.sigmoid(h)
    out = (jnp.dot(h.astype(jnp.bfloat16), params["w2"],
                   preferred_element_type=jnp.float32)
           + params["b2"])
    std = jnp.sqrt((jnp.exp(2.0 * t * LOG_SIGMA) - 1.0) / (2.0 * LOG_SIGMA))
    return (out / std[:, None]).reshape(B, C, H, W)


# ------------------------------- main ------------------------------------------
if __name__ == "__main__":
    key = jax.random.PRNGKey(0)
    k = jax.random.split(key, 10)

    params = {
        "time_w":      jax.random.normal(k[0], (1, EMB), jnp.float32),
        "label_embed": jax.random.normal(k[1], (NUM_CLASSES, EMB), jnp.float32) * 0.1,
        "w1":          (jax.random.normal(k[2], (D, HID), jnp.float32)
                        / np.sqrt(D)).astype(jnp.bfloat16),
        "wc":          (jax.random.normal(k[3], (EMB, HID), jnp.float32)
                        / np.sqrt(EMB)).astype(jnp.bfloat16),
        "b1":          jax.random.normal(k[8], (1, HID), jnp.float32) * 0.1,
        "w2":          (jax.random.normal(k[4], (HID, D), jnp.float32)
                        / np.sqrt(HID)).astype(jnp.bfloat16),
        "b2":          jax.random.normal(k[9], (1, D), jnp.float32) * 0.1,
    }

    x = jax.random.normal(k[5], (B, C, H, W), jnp.float32)
    eps = 1e-5
    t = jax.random.uniform(k[6], (B,), jnp.float32) * (1.0 - eps) + eps
    label = jax.random.randint(k[7], (B,), 0, NUM_CLASSES, jnp.int32)

    out = conditional_score_forward(x, t, label, params)
    out = jax.block_until_ready(out)

    ref = reference_forward(x, t, label, params)
    np.testing.assert_allclose(np.asarray(out), np.asarray(ref),
                               rtol=1e-3, atol=1e-3)
    print("KERNEL_OK")
</pallas_src>

<mosaic_0001>
module attributes {stable_mosaic.version = 11 : i64} {
  func.func @cond_score_kernel(%arg0: i32, %arg1: memref<2xi32, #tpu.memory_space<smem>>, %arg2: memref<2x1024xf32, #tpu.memory_space<vmem>>, %arg3: memref<2x1xf32, #tpu.memory_space<vmem>>, %arg4: memref<1x128xf32, #tpu.memory_space<vmem>>, %arg5: memref<10x128xf32, #tpu.memory_space<vmem>>, %arg6: memref<1024x128xbf16, #tpu.memory_space<vmem>>, %arg7: memref<128x128xbf16, #tpu.memory_space<vmem>>, %arg8: memref<1x128xf32, #tpu.memory_space<vmem>>, %arg9: memref<128x1024xbf16, #tpu.memory_space<vmem>>, %arg10: memref<1x1024xf32, #tpu.memory_space<vmem>>, %arg11: memref<2x1024xf32, #tpu.memory_space<vmem>>) attributes {dimension_semantics = [#tpu.dimension_semantics<arbitrary>], iteration_bounds = array<i64: 1>, scalar_prefetch = 1 : i64, scratch_operands = 0 : i64, tpu.core_type = #tpu.core_type<tc>, window_params = [{pipeline_mode = #tpu.pipeline_mode<synchronous>, transform_indices = @transform_0, window_bounds = array<i64: 2, 1024>}, {pipeline_mode = #tpu.pipeline_mode<synchronous>, transform_indices = @transform_1, window_bounds = array<i64: 2, 1>}, {pipeline_mode = #tpu.pipeline_mode<synchronous>, transform_indices = @transform_2, window_bounds = array<i64: 1, 128>}, {pipeline_mode = #tpu.pipeline_mode<synchronous>, transform_indices = @transform_3, window_bounds = array<i64: 10, 128>}, {pipeline_mode = #tpu.pipeline_mode<synchronous>, transform_indices = @transform_4, window_bounds = array<i64: 1024, 128>}, {pipeline_mode = #tpu.pipeline_mode<synchronous>, transform_indices = @transform_5, window_bounds = array<i64: 128, 128>}, {pipeline_mode = #tpu.pipeline_mode<synchronous>, transform_indices = @transform_6, window_bounds = array<i64: 1, 128>}, {pipeline_mode = #tpu.pipeline_mode<synchronous>, transform_indices = @transform_7, window_bounds = array<i64: 128, 1024>}, {pipeline_mode = #tpu.pipeline_mode<synchronous>, transform_indices = @transform_8, window_bounds = array<i64: 1, 1024>}, {pipeline_mode = #tpu.pipeline_mode<synchronous>, transform_indices = @transform_9, window_bounds = array<i64: 2, 1024>}]} {
    %c0 = arith.constant 0 : index
    %c0_0 = arith.constant 0 : index
    %0 = vector.load %arg3[%c0, %c0_0] : memref<2x1xf32, #tpu.memory_space<vmem>>, vector<2x1xf32>
    %cst = arith.constant 6.28318548 : f32
    %1 = vector.broadcast %cst : f32 to vector<2x1xf32>
    %2 = arith.mulf %1, %0 : vector<2x1xf32>
    %c0_1 = arith.constant 0 : index
    %c0_2 = arith.constant 0 : index
    %3 = vector.load %arg4[%c0_1, %c0_2] : memref<1x128xf32, #tpu.memory_space<vmem>>, vector<1x128xf32>
    %4 = vector.broadcast %2 : vector<2x1xf32> to vector<2x128xf32>
    %5 = vector.broadcast %3 : vector<1x128xf32> to vector<2x128xf32>
    %6 = arith.mulf %4, %5 : vector<2x128xf32>
    %7 = math.sin %6 : vector<2x128xf32>
    %c0_3 = arith.constant 0 : index
    %c0_4 = arith.constant 0 : index
    %8 = vector.load %arg5[%c0_3, %c0_4] : memref<10x128xf32, #tpu.memory_space<vmem>>, vector<10x128xf32>
    %9 = tpu.iota {dimensions = array<i32: 0>} : vector<10x1xi32>
    %c0_5 = arith.constant 0 : index
    %10 = memref.load %arg1[%c0_5] : memref<2xi32, #tpu.memory_space<smem>>
    %11 = vector.broadcast %10 : i32 to vector<10x1xi32>
    %12 = arith.cmpi eq, %9, %11 : vector<10x1xi32>
    %13 = arith.extui %12 : vector<10x1xi1> to vector<10x1xi32>
    %14 = arith.sitofp %13 : vector<10x1xi32> to vector<10x1xf32>
    %15 = vector.broadcast %14 : vector<10x1xf32> to vector<10x128xf32>
    %16 = arith.mulf %8, %15 : vector<10x128xf32>
    %cst_6 = arith.constant dense<0.000000e+00> : vector<128xf32>
    %17 = vector.multi_reduction <add>, %16, %cst_6 [0] : vector<10x128xf32> to vector<128xf32>
    %18 = vector.shape_cast %17 : vector<128xf32> to vector<1x128xf32>
    %c1 = arith.constant 1 : index
    %19 = memref.load %arg1[%c1] : memref<2xi32, #tpu.memory_space<smem>>
    %20 = vector.broadcast %19 : i32 to vector<10x1xi32>
    %21 = arith.cmpi eq, %9, %20 : vector<10x1xi32>
    %22 = arith.extui %21 : vector<10x1xi1> to vector<10x1xi32>
    %23 = arith.sitofp %22 : vector<10x1xi32> to vector<10x1xf32>
    %24 = vector.broadcast %23 : vector<10x1xf32> to vector<10x128xf32>
    %25 = arith.mulf %8, %24 : vector<10x128xf32>
    %cst_7 = arith.constant dense<0.000000e+00> : vector<128xf32>
    %26 = vector.multi_reduction <add>, %25, %cst_7 [0] : vector<10x128xf32> to vector<128xf32>
    %27 = vector.shape_cast %26 : vector<128xf32> to vector<1x128xf32>
    %28 = tpu.concatenate %18, %27 in 0 : vector<1x128xf32>, vector<1x128xf32> -> vector<2x128xf32>
    %29 = arith.addf %7, %28 : vector<2x128xf32>
    %c0_8 = arith.constant 0 : index
    %c0_9 = arith.constant 0 : index
    %30 = vector.load %arg2[%c0_8, %c0_9] : memref<2x1024xf32, #tpu.memory_space<vmem>>, vector<2x1024xf32>
    %31 = arith.truncf %30 : vector<2x1024xf32> to vector<2x1024xbf16>
    %c0_10 = arith.constant 0 : index
    %c0_11 = arith.constant 0 : index
    %32 = vector.load %arg6[%c0_10, %c0_11] : memref<1024x128xbf16, #tpu.memory_space<vmem>>, vector<1024x128xbf16>
    %cst_12 = arith.constant dense<0.000000e+00> : vector<2x128xf32>
    %33 = tpu.matmul %31, %32, %cst_12 {dimension_numbers = #tpu.dot_dimension_numbers<[1], [0], [0], [1], [0, 0, 1, 1], [], []>} : vector<2x1024xbf16>, vector<1024x128xbf16>, vector<2x128xf32> -> vector<2x128xf32>
    %34 = arith.truncf %29 : vector<2x128xf32> to vector<2x128xbf16>
    %c0_13 = arith.constant 0 : index
    %c0_14 = arith.constant 0 : index
    %35 = vector.load %arg7[%c0_13, %c0_14] : memref<128x128xbf16, #tpu.memory_space<vmem>>, vector<128x128xbf16>
    %cst_15 = arith.constant dense<0.000000e+00> : vector<2x128xf32>
    %36 = tpu.matmul %34, %35, %cst_15 {dimension_numbers = #tpu.dot_dimension_numbers<[1], [0], [0], [1], [0, 0, 1, 1], [], []>} : vector<2x128xbf16>, vector<128x128xbf16>, vector<2x128xf32> -> vector<2x128xf32>
    %37 = arith.addf %33, %36 : vector<2x128xf32>
    %c0_16 = arith.constant 0 : index
    %c0_17 = arith.constant 0 : index
    %38 = vector.load %arg8[%c0_16, %c0_17] : memref<1x128xf32, #tpu.memory_space<vmem>>, vector<1x128xf32>
    %39 = vector.broadcast %38 : vector<1x128xf32> to vector<2x128xf32>
    %40 = arith.addf %37, %39 : vector<2x128xf32>
    %41 = arith.negf %40 : vector<2x128xf32>
    %42 = math.exp %41 : vector<2x128xf32>
    %cst_18 = arith.constant 1.000000e+00 : f32
    %43 = vector.broadcast %cst_18 : f32 to vector<2x128xf32>
    %44 = arith.addf %43, %42 : vector<2x128xf32>
    %45 = arith.divf %43, %44 : vector<2x128xf32>
    %46 = arith.mulf %40, %45 : vector<2x128xf32>
    %47 = arith.truncf %46 : vector<2x128xf32> to vector<2x128xbf16>
    %c0_19 = arith.constant 0 : index
    %c0_20 = arith.constant 0 : index
    %48 = vector.load %arg9[%c0_19, %c0_20] : memref<128x1024xbf16, #tpu.memory_space<vmem>>, vector<128x1024xbf16>
    %cst_21 = arith.constant dense<0.000000e+00> : vector<2x1024xf32>
    %49 = tpu.matmul %47, %48, %cst_21 {dimension_numbers = #tpu.dot_dimension_numbers<[1], [0], [0], [1], [0, 0, 1, 1], [], []>} : vector<2x128xbf16>, vector<128x1024xbf16>, vector<2x1024xf32> -> vector<2x1024xf32>
    %c0_22 = arith.constant 0 : index
    %c0_23 = arith.constant 0 : index
    %50 = vector.load %arg10[%c0_22, %c0_23] : memref<1x1024xf32, #tpu.memory_space<vmem>>, vector<1x1024xf32>
    %51 = vector.broadcast %50 : vector<1x1024xf32> to vector<2x1024xf32>
    %52 = arith.addf %49, %51 : vector<2x1024xf32>
    %cst_24 = arith.constant 2.000000e+00 : f32
    %53 = vector.broadcast %cst_24 : f32 to vector<2x1xf32>
    %54 = arith.mulf %53, %0 : vector<2x1xf32>
    %cst_25 = arith.constant 3.21887589 : f32
    %55 = vector.broadcast %cst_25 : f32 to vector<2x1xf32>
    %56 = arith.mulf %54, %55 : vector<2x1xf32>
    %57 = math.exp %56 : vector<2x1xf32>
    %cst_26 = arith.constant 1.000000e+00 : f32
    %58 = vector.broadcast %cst_26 : f32 to vector<2x1xf32>
    %59 = arith.subf %57, %58 : vector<2x1xf32>
    %cst_27 = arith.constant 6.43775177 : f32
    %60 = vector.broadcast %cst_27 : f32 to vector<2x1xf32>
    %61 = arith.divf %59, %60 : vector<2x1xf32>
    %62 = math.rsqrt %61 : vector<2x1xf32>
    %63 = vector.broadcast %62 : vector<2x1xf32> to vector<2x1024xf32>
    %64 = arith.mulf %52, %63 : vector<2x1024xf32>
    %c0_28 = arith.constant 0 : index
    %c0_29 = arith.constant 0 : index
    %65 = vector.load %arg11[%c0_28, %c0_29] : memref<2x1024xf32, #tpu.memory_space<vmem>>, vector<2x1024xf32>
    tpu.vector_store %arg11[%c0_28, %c0_29], %64 {strides = array<i32>} : memref<2x1024xf32, #tpu.memory_space<vmem>>, vector<2x1024xf32>,
    return
  }
  func.func @transform_0(%arg0: i32, %arg1: memref<2xi32, #tpu.memory_space<smem>>) -> (i32, i32) {
    %c0_i32 = arith.constant 0 : i32
    %c0_i32_0 = arith.constant 0 : i32
    %c0_i32_1 = arith.constant 0 : i32
    return %c0_i32, %c0_i32_0 : i32, i32
  }
  func.func @transform_1(%arg0: i32, %arg1: memref<2xi32, #tpu.memory_space<smem>>) -> (i32, i32) {
    %c0_i32 = arith.constant 0 : i32
    %c0_i32_0 = arith.constant 0 : i32
    %c0_i32_1 = arith.constant 0 : i32
    return %c0_i32, %c0_i32_0 : i32, i32
  }
  func.func @transform_2(%arg0: i32, %arg1: memref<2xi32, #tpu.memory_space<smem>>) -> (i32, i32) {
    %c0_i32 = arith.constant 0 : i32
    %c0_i32_0 = arith.constant 0 : i32
    %c0_i32_1 = arith.constant 0 : i32
    return %c0_i32, %c0_i32_0 : i32, i32
  }
  func.func @transform_3(%arg0: i32, %arg1: memref<2xi32, #tpu.memory_space<smem>>) -> (i32, i32) {
    %c0_i32 = arith.constant 0 : i32
    %c0_i32_0 = arith.constant 0 : i32
    %c0_i32_1 = arith.constant 0 : i32
    return %c0_i32, %c0_i32_0 : i32, i32
  }
  func.func @transform_4(%arg0: i32, %arg1: memref<2xi32, #tpu.memory_space<smem>>) -> (i32, i32) {
    %c0_i32 = arith.constant 0 : i32
    %c0_i32_0 = arith.constant 0 : i32
    %c0_i32_1 = arith.constant 0 : i32
    return %c0_i32, %c0_i32_0 : i32, i32
  }
  func.func @transform_5(%arg0: i32, %arg1: memref<2xi32, #tpu.memory_space<smem>>) -> (i32, i32) {
    %c0_i32 = arith.constant 0 : i32
    %c0_i32_0 = arith.constant 0 : i32
    %c0_i32_1 = arith.constant 0 : i32
    return %c0_i32, %c0_i32_0 : i32, i32
  }
  func.func @transform_6(%arg0: i32, %arg1: memref<2xi32, #tpu.memory_space<smem>>) -> (i32, i32) {
    %c0_i32 = arith.constant 0 : i32
    %c0_i32_0 = arith.constant 0 : i32
    %c0_i32_1 = arith.constant 0 : i32
    return %c0_i32, %c0_i32_0 : i32, i32
  }
  func.func @transform_7(%arg0: i32, %arg1: memref<2xi32, #tpu.memory_space<smem>>) -> (i32, i32) {
    %c0_i32 = arith.constant 0 : i32
    %c0_i32_0 = arith.constant 0 : i32
    %c0_i32_1 = arith.constant 0 : i32
    return %c0_i32, %c0_i32_0 : i32, i32
  }
  func.func @transform_8(%arg0: i32, %arg1: memref<2xi32, #tpu.memory_space<smem>>) -> (i32, i32) {
    %c0_i32 = arith.constant 0 : i32
    %c0_i32_0 = arith.constant 0 : i32
    %c0_i32_1 = arith.constant 0 : i32
    return %c0_i32, %c0_i32_0 : i32, i32
  }
  func.func @transform_9(%arg0: i32, %arg1: memref<2xi32, #tpu.memory_space<smem>>) -> (i32, i32) {
    %c0_i32 = arith.constant 0 : i32
    %c0_i32_0 = arith.constant 0 : i32
    %c0_i32_1 = arith.constant 0 : i32
    return %c0_i32, %c0_i32_0 : i32, i32
  }
}

</mosaic_0001>

<llo_original>
// kernel: tpu_custom_call.1
$region0: #{tpu_custom_call.1}
  #allocation0 [shape = 'u32[]', space=smem, size = 0x4, offset = 0x4, fixed_abs, tag = 'smem constant byte address 0x4 - core index']
  #allocation1 [shape = 'u32[72,128]{1,0:T(1,128)}', space=vmem, size = 0x9000, scoped, tag = 'internal scratch']
  #allocation2 [shape = 's32[1]{0}', space=sflag, size = 0x4, scoped, tag = 'scoped memory for tpu_custom_call.1']
  #allocation3 [shape = 'u8[512]{0}', space=smem, size = 0x200, scoped, tag = 'prefetched SMEM operand 0']
  %s0 = inlined_call_operand.vmem [shape: s32[2], index: 0, kind: input, shape index: {}]
  %s1 = inlined_call_operand.hbm [shape: f32[2,1024], index: 1, kind: input, shape index: {}]
  %s2 = inlined_call_operand.vmem [shape: f32[2,1], index: 2, kind: input, shape index: {}]
  %s3 = inlined_call_operand.vmem [shape: f32[1,128], index: 3, kind: input, shape index: {}]
  %s4 = inlined_call_operand.hbm [shape: f32[10,128], index: 4, kind: input, shape index: {}]
  %s5 = inlined_call_operand.hbm [shape: bf16[1024,128], index: 5, kind: input, shape index: {}]
  %s6 = inlined_call_operand.hbm [shape: bf16[128,128], index: 6, kind: input, shape index: {}]
  %s7 = inlined_call_operand.vmem [shape: f32[1,128], index: 7, kind: input, shape index: {}]
  %s8 = inlined_call_operand.hbm [shape: bf16[128,1024], index: 8, kind: input, shape index: {}]
  %s9 = inlined_call_operand.vmem [shape: f32[1,1024], index: 9, kind: input, shape index: {}]
  %s10 = inlined_call_operand.hbm [shape: f32[2,1024], index: 10, kind: output, shape index: {}]
  %s11 = sld [smem:[#allocation0]]
  $region66: #{tpu_custom_call.1} parent=0
    _
  %s13 = ssub.s32 1, %s11
  %s14 = scalar_select 0, %s13, %s11
  %s16 = sshll.u32 %s0, 4
  %s17 = int_to_ptr.vmem [resolvable:$true] %s16
  %19 = dma.vmem_to_smem %s17, 16, [#allocation3], [#allocation2]
  %21 = dma.done [#allocation2], 16
  %22 = sfence
  $region1: #{tpu_custom_call.1} parent=0
    #allocation4 [shape = 'u8[8192]{0}', space=vmem, size = 0x2000, scoped, tag = 'input window, operand 1, single buffered']
    #allocation5 [shape = 's32[1]{0}', space=sflag, size = 0x4, scoped, tag = 'scoped memory for tpu_custom_call.1']
    #allocation6 [shape = 's32[1]{0}', space=sflag, size = 0x4, scoped, tag = 'scoped memory for tpu_custom_call.1']
    #allocation7 [shape = 'u8[8192]{0}', space=vmem, size = 0x2000, scoped, tag = 'input window, operand 4, single buffered']
    #allocation8 [shape = 's32[1]{0}', space=sflag, size = 0x4, scoped, tag = 'scoped memory for tpu_custom_call.1']
    #allocation9 [shape = 'u8[262144]{0}', space=vmem, size = 0x40000, scoped, tag = 'input window, operand 5, single buffered']
    #allocation10 [shape = 'u8[32768]{0}', space=vmem, size = 0x8000, scoped, tag = 'input window, operand 6, single buffered']
    #allocation11 [shape = 's32[1]{0}', space=sflag, size = 0x4, scoped, tag = 'scoped memory for tpu_custom_call.1']
    #allocation12 [shape = 'u8[262144]{0}', space=vmem, size = 0x40000, scoped, tag = 'input window, operand 8, single buffered']
    #allocation13 [shape = 'u8[8192]{0}', space=vmem, size = 0x2000, scoped, tag = 'output window, operand 0, single buffered']
    %23 = vsyncpa [#allocation5], 0
    %24 = vsyncpa [#allocation8], 0
    %25 = vsyncpa [#allocation11], 0
    %26 = vsyncpa [#allocation6], 0
    // Predicated region
    $region2: #{tpu_custom_call.1} parent=1 // pred_check
      _
    $region3: #{tpu_custom_call.1} parent=1 // pred_check_branch
      %28 = sbr.rel (0) target = $region5
    $region4: #{tpu_custom_call.1} parent=1 // pred_region
      %30 = vsyncadd [#allocation5], 0
      %s32 = sshll.u32 %s1, 4
      %s33 = int_to_ptr.hbm [resolvable:$true] %s32
      %s34 = sshll.u32 [#allocation4], 4
      %s35 = int_to_ptr.vmem [resolvable:$true] %s34
      %37 = dma.hbm_to_vmem [thread:$0]  %s33, 256, %s35, [#allocation5]
    $region5: #{tpu_custom_call.1} parent=1 // pred_fallthru
      _
    // Predicated region
    $region6: #{tpu_custom_call.1} parent=1 // pred_check
      _
    $region7: #{tpu_custom_call.1} parent=1 // pred_check_branch
      %39 = sbr.rel (0) target = $region9
    $region8: #{tpu_custom_call.1} parent=1 // pred_region
      _
    $region9: #{tpu_custom_call.1} parent=1 // pred_fallthru
      _
    // Predicated region
    $region10: #{tpu_custom_call.1} parent=1 // pred_check
      _
    $region11: #{tpu_custom_call.1} parent=1 // pred_check_branch
      %41 = sbr.rel (0) target = $region13
    $region12: #{tpu_custom_call.1} parent=1 // pred_region
      _
    $region13: #{tpu_custom_call.1} parent=1 // pred_fallthru
      _
    // Predicated region
    $region14: #{tpu_custom_call.1} parent=1 // pred_check
      _
    $region15: #{tpu_custom_call.1} parent=1 // pred_check_branch
      %43 = sbr.rel (0) target = $region17
    $region16: #{tpu_custom_call.1} parent=1 // pred_region
      %45 = vsyncadd [#allocation8], 0
      %s46 = sshll.u32 %s4, 4
      %s47 = int_to_ptr.hbm [resolvable:$true] %s46
      %s48 = sshll.u32 [#allocation7], 4
      %s49 = int_to_ptr.vmem [resolvable:$true] %s48
      %54 = dma.hbm_to_vmem [thread:$0]  %s47, 256, %s49, [#allocation8], 128, 128, 8
    $region17: #{tpu_custom_call.1} parent=1 // pred_fallthru
      _
    // Predicated region
    $region18: #{tpu_custom_call.1} parent=1 // pred_check
      _
    $region19: #{tpu_custom_call.1} parent=1 // pred_check_branch
      %56 = sbr.rel (0) target = $region21
    $region20: #{tpu_custom_call.1} parent=1 // pred_region
      %58 = vsyncadd [#allocation8], 0
      %s59 = sshll.u32 %s5, 4
      %s60 = int_to_ptr.hbm [resolvable:$true] %s59
      %s61 = sshll.u32 [#allocation9], 4
      %s62 = int_to_ptr.vmem [resolvable:$true] %s61
      %67 = dma.hbm_to_vmem [thread:$0]  %s60, 8192, %s62, [#allocation8], 64, 64, 4
    $region21: #{tpu_custom_call.1} parent=1 // pred_fallthru
      _
    // Predicated region
    $region22: #{tpu_custom_call.1} parent=1 // pred_check
      _
    $region23: #{tpu_custom_call.1} parent=1 // pred_check_branch
      %69 = sbr.rel (0) target = $region25
    $region24: #{tpu_custom_call.1} parent=1 // pred_region
      %71 = vsyncadd [#allocation11], 0
      %s72 = sshll.u32 %s6, 4
      %s73 = int_to_ptr.hbm [resolvable:$true] %s72
      %s74 = sshll.u32 [#allocation10], 4
      %s75 = int_to_ptr.vmem [resolvable:$true] %s74
      %80 = dma.hbm_to_vmem [thread:$0]  %s73, 1024, %s75, [#allocation11], 64, 64, 4
    $region25: #{tpu_custom_call.1} parent=1 // pred_fallthru
      _
    // Predicated region
    $region26: #{tpu_custom_call.1} parent=1 // pred_check
      _
    $region27: #{tpu_custom_call.1} parent=1 // pred_check_branch
      %82 = sbr.rel (0) target = $region29
    $region28: #{tpu_custom_call.1} parent=1 // pred_region
      _
    $region29: #{tpu_custom_call.1} parent=1 // pred_fallthru
      _
    // Predicated region
    $region30: #{tpu_custom_call.1} parent=1 // pred_check
      _
    $region31: #{tpu_custom_call.1} parent=1 // pred_check_branch
      %84 = sbr.rel (0) target = $region33
    $region32: #{tpu_custom_call.1} parent=1 // pred_region
      %86 = vsyncadd [#allocation11], 0
      %s87 = sshll.u32 %s8, 4
      %s88 = int_to_ptr.hbm [resolvable:$true] %s87
      %s89 = sshll.u32 [#allocation12], 4
      %s90 = int_to_ptr.vmem [resolvable:$true] %s89
      %95 = dma.hbm_to_vmem [thread:$0]  %s88, 8192, %s90, [#allocation11], 512, 512, 32
    $region33: #{tpu_custom_call.1} parent=1 // pred_fallthru
      _
    // Predicated region
    $region34: #{tpu_custom_call.1} parent=1 // pred_check
      _
    $region35: #{tpu_custom_call.1} parent=1 // pred_check_branch
      %97 = sbr.rel (0) target = $region37
    $region36: #{tpu_custom_call.1} parent=1 // pred_region
      _
    $region37: #{tpu_custom_call.1} parent=1 // pred_fallthru
      _
    // Predicated region
    $region38: #{tpu_custom_call.1} parent=1 // pred_check
      _
    $region39: #{tpu_custom_call.1} parent=1 // pred_check_branch
      %99 = sbr.rel (0) target = $region41
    $region40: #{tpu_custom_call.1} parent=1 // pred_region
      %101 = dma.done [#allocation5], 256
    $region41: #{tpu_custom_call.1} parent=1 // pred_fallthru
      _
    // Predicated region
    $region42: #{tpu_custom_call.1} parent=1 // pred_check
      _
    $region43: #{tpu_custom_call.1} parent=1 // pred_check_branch
      %103 = sbr.rel (0) target = $region45
    $region44: #{tpu_custom_call.1} parent=1 // pred_region
      %105 = dma.done [#allocation8], 256
    $region45: #{tpu_custom_call.1} parent=1 // pred_fallthru
      _
    // Predicated region
    $region46: #{tpu_custom_call.1} parent=1 // pred_check
      _
    $region47: #{tpu_custom_call.1} parent=1 // pred_check_branch
      %107 = sbr.rel (0) target = $region49
    $region48: #{tpu_custom_call.1} parent=1 // pred_region
      %109 = dma.done [#allocation8], 8192
    $region49: #{tpu_custom_call.1} parent=1 // pred_fallthru
      _
    // Predicated region
    $region50: #{tpu_custom_call.1} parent=1 // pred_check
      _
    $region51: #{tpu_custom_call.1} parent=1 // pred_check_branch
      %111 = sbr.rel (0) target = $region53
    $region52: #{tpu_custom_call.1} parent=1 // pred_region
      %113 = dma.done [#allocation11], 1024
    $region53: #{tpu_custom_call.1} parent=1 // pred_fallthru
      _
    // Predicated region
    $region54: #{tpu_custom_call.1} parent=1 // pred_check
      _
    $region55: #{tpu_custom_call.1} parent=1 // pred_check_branch
      %115 = sbr.rel (0) target = $region57
    $region56: #{tpu_custom_call.1} parent=1 // pred_region
      %117 = dma.done [#allocation11], 8192
    $region57: #{tpu_custom_call.1} parent=1 // pred_fallthru
      _
    %v118 = vld [vmem:[%s2] sm:$0x3]
    %v119 = vmul.f32 %v118, 6.2831855
    %v120 = vld [vmem:[%s3] sm:$0x1]
    %122 = vset.pattern.permute.xlu0 0
    %123 = vperm.xlu0 %122, %v119
    %v124 = vpop.permute.xlu0 %123
    %v127 = vperm.slane %v120, 0
    %v129 = vmul.f32 %v124, %v127
    %v130 = vand.u32 2147483647, %v129
    %vm131 = vcmp.le.f32.partialorder %v130, 0.7853982
    %vm132 = vcmp.lt.s32.totalorder %v129, 0
    %v133 = vand.u32 %v129, 2139095040
    %v134 = vshrl.u32 %v133, 23
    %v135 = vsub.s32 %v134, 127
    %v136 = vand.u32 2147483647, %v129
    %v137 = vand.u32 %v136, 8388607
    %v138 = vor.u32 %v137, 8388608
    %v139 = vsub.s32 0, %v138
    %v140 = vadd.s32 %v135, 1
    %vm141 = vcmp.gt.s32.totalorder %v140, 0
    %v142 = vsel %vm141, %v140, 0
    %v143 = vshrl.u32 %v142, 5
    %v144 = vand.u32 %v142, 31
    %v145 = vsub.s32 32, %v144
    %v146 = vshrl.u32 683565275, %v145
    %v147 = vshll.u32 683565275, %v144
    %v148 = vshrl.u32 2475754826, %v145
    %v149 = vor.u32 %v147, %v148
    %v150 = vshll.u32 2475754826, %v144
    %v151 = vshrl.u32 2131351028, %v145
    %v152 = vor.u32 %v150, %v151
    %v153 = vshll.u32 2131351028, %v144
    %v154 = vshrl.u32 2102212464, %v145
    %v155 = vor.u32 %v153, %v154
    %v156 = vshll.u32 2102212464, %v144
    %v157 = vshrl.u32 920167782, %v145
    %v158 = vor.u32 %v156, %v157
    %v159 = vshll.u32 920167782, %v144
    %v160 = vshrl.u32 1326507024, %v145
    %v161 = vor.u32 %v159, %v160
    %vm162 = vcmp.lt.s32.totalorder %v143, 1
    %vm163 = vcmp.lt.s32.totalorder %v143, 2
    %vm164 = vcmp.lt.s32.totalorder %v143, 3
    %vm165 = vcmp.lt.s32.totalorder %v143, 4
    %v166 = vsel %vm162, %v146, %v149
    %v167 = vsel %vm165, %v155, 2102212464
    %v168 = vsel %vm164, %v152, %v167
    %v169 = vsel %vm163, %v166, %v168
    %v170 = vsel %vm162, %v149, %v152
    %v171 = vsel %vm165, %v158, 920167782
    %v172 = vsel %vm164, %v155, %v171
    %v173 = vsel %vm163, %v170, %v172
    %v174 = vsel %vm162, %v152, %v155
    %v175 = vsel %vm165, %v161, 1326507024
    %v176 = vsel %vm164, %v158, %v175
    %v177 = vsel %vm163, %v174, %v176
    %v178 = vshll.u32 %v138, 8
    %v179 = vand.u32 %v178, 65535
    %v180 = vshrl.u32 %v178, 16
    %v181 = vand.u32 %v177, 65535
    %v182 = vshrl.u32 %v177, 16
    %v183 = vmul.u32 %v179, %v181
    %v184 = vmul.u32 %v179, %v182
    %v185 = vmul.u32 %v180, %v181
    %v186 = vmul.u32 %v180, %v182
    %v187 = vshll.u32 %v184, 16
    %v188 = vshrl.u32 %v184, 16
    %v189 = vshll.u32 %v185, 16
    %v190 = vshrl.u32 %v185, 16
    %vm191 = vc.u32 %v183, %v187
    %v192 = vsel %vm191, 1, 0
    %v193 = vadd.s32 %v183, %v187
    %v194 = vadd.s32 %v186, %v192
    %vm195 = vc.u32 %v193, %v189
    %v196 = vsel %vm195, 1, 0
    %v197 = vadd.s32 %v193, %v189
    %v198 = vadd.s32 %v194, %v196
    %v199 = vadd.s32 %v198, %v188
    %v200 = vadd.s32 %v199, %v190
    %v201 = vand.u32 %v178, 65535
    %v202 = vshrl.u32 %v178, 16
    %v203 = vand.u32 %v173, 65535
    %v204 = vshrl.u32 %v173, 16
    %v205 = vmul.u32 %v201, %v203
    %v206 = vmul.u32 %v201, %v204
    %v207 = vmul.u32 %v202, %v203
    %v208 = vmul.u32 %v202, %v204
    %v209 = vshll.u32 %v206, 16
    %v210 = vshrl.u32 %v206, 16
    %v211 = vshll.u32 %v207, 16
    %v212 = vshrl.u32 %v207, 16
    %vm213 = vc.u32 %v205, %v209
    %v214 = vsel %vm213, 1, 0
    %v215 = vadd.s32 %v205, %v209
    %v216 = vadd.s32 %v208, %v214
    %vm217 = vc.u32 %v215, %v211
    %v218 = vsel %vm217, 1, 0
    %v219 = vadd.s32 %v215, %v211
    %v220 = vadd.s32 %v216, %v218
    %v221 = vadd.s32 %v220, %v210
    %v222 = vadd.s32 %v221, %v212
    %v223 = vmul.u32 %v178, %v169
    %v224 = vadd.s32 %v200, %v219
    %vm225 = vc.u32 %v200, %v219
    %v226 = vadd.s32 %v222, 1
    %v227 = vsel %vm225, %v226, %v222
    %v228 = vadd.s32 %v223, %v227
    %v229 = vadd.s32 %v228, 536870912
    %v230 = vshrl.u32 %v229, 30
    %v231 = vshll.u32 %v230, 30
    %v232 = vsub.s32 %v228, %v231
    %vm233 = vcmp.lt.s32.totalorder %v232, 0
    %v234 = vsub.s32 0, %v232
    %v235 = vsel %vm233, %v234, %v232
    %v236 = vclz %v235
    %v237 = vsub.s32 %v236, 2
    %vm238 = vcmp.gt.s32.totalorder 0, %v237
    %v239 = vsel %vm238, 0, %v237
    %v240 = vsub.s32 32, %v239
    %v241 = vshll.u32 %v232, %v239
    %v242 = vshrl.u32 %v224, %v240
    %v243 = vor.u32 %v241, %v242
    %v244 = vsub.s32 4294967266, %v239
    %v245 = vadd.s32 %v244, 127
    %v246 = vshll.u32 %v245, 23
    %v247 = vor.u32 4788187, %v246
    %v248 = vand.u32 2147483647, %v247
    %v250 = vcvt.s32.f32 %v243
    %v251 = vmul.f32 %v250, %v248
    %v252 = vxor.u32 %v251, 2147483648
    %v253 = vsel %vm132, %v252, %v251
    %v254 = vsub.s32 4, %v230
    %v255 = vsel %vm132, %v254, %v230
    %v256 = vsel %vm131, %v129, %v253
    %v257 = vsel %vm131, 0, %v255
    %v258 = vmul.f32 %v256, %v256
    %v259 = vmul.f32 %v258, -0.001358992
    %v260 = vadd.f32 %v259, 0.041655596
    %v261 = vmul.f32 %v258, %v260
    %v262 = vadd.f32 %v261, -0.4999988
    %v263 = vmul.f32 %v258, %v262
    %v264 = vadd.f32 1.0, %v263
    %v265 = vmul.f32 %v256, %v256
    %v266 = vmul.f32 %v265, -0.00019511016
    %v267 = vadd.f32 %v266, 0.008332121
    %v268 = vmul.f32 %v265, %v267
    %v269 = vadd.f32 %v268, -0.16666654
    %v270 = vmul.f32 %v265, %v269
    %v271 = vadd.f32 %v270, 1.0
    %v272 = vmul.f32 %v271, %v256
    %vm273 = vweird.f32 %v129
    %v274 = vadd.s32 %v257, 3
    %v275 = vand.u32 %v274, 3
    %vm276 = vcmp.lt.s32.totalorder %v275, 2
    %vm277 = vcmp.eq.s32.totalorder %v275, 0
    %v278 = vxor.u32 %v272, 2147483648
    %v279 = vsel %vm277, %v264, %v278
    %vm280 = vcmp.eq.s32.totalorder %v275, 2
    %v281 = vxor.u32 %v264, 2147483648
    %v282 = vsel %vm280, %v281, %v272
    %v283 = vsel %vm276, %v279, %v282
    %v284 = vsel %vm273, nan, %v283
    %v285 = vld [vmem:[#allocation7] sm:$0xff]
    %v286 = vld [vmem:[#allocation7 + $0x8] sm:$0x3]
    %v287 = vlaneseq
    %v288 = vshrl.u32 %v287, 7
    %v289 = vadd.s32 %v288, 8
    %s290 = sld [smem:[#allocation3]]
    %v291 = vstv %s290
    %vm292 = vcmp.eq.s32.totalorder %v288, %v291
    %vm293 = vcmp.eq.s32.totalorder %v289, %v291
    %v294 = vsel %vm292, 1, 0
    %v295 = vsel %vm293, 1, 0
    %v296 = vcvt.s32.f32 %v294
    %v297 = vcvt.s32.f32 %v295
    %v298 = vmul.f32 %v285, %v296
    %v299 = vmul.f32 %v286, %v297
    %vm300 = vcmask 1041408
    %v301 = vsel %vm300, %v299, 0.0
    %v302 = vadd.f32 %v298, %v301
    %v303 = vrot.slane %v302, 4
    %v304 = vadd.f32 %v302, %v303
    %v305 = vrot.slane %v304, 2
    %v306 = vadd.f32 %v304, %v305
    %v307 = vrot.slane %v306, 1
    %v308 = vadd.f32 %v306, %v307
    %s309 = sld [smem:[#allocation3 + $0x1]]
    %v310 = vstv %s309
    %vm311 = vcmp.eq.s32.totalorder %v288, %v310
    %vm312 = vcmp.eq.s32.totalorder %v289, %v310
    %v313 = vsel %vm311, 1, 0
    %v314 = vsel %vm312, 1, 0
    %v315 = vcvt.s32.f32 %v313
    %v316 = vcvt.s32.f32 %v314
    %v317 = vmul.f32 %v285, %v315
    %v318 = vmul.f32 %v286, %v316
    %v319 = vsel %vm300, %v318, 0.0
    %v320 = vadd.f32 %v317, %v319
    %v321 = vrot.slane %v320, 4
    %v322 = vadd.f32 %v320, %v321
    %v323 = vrot.slane %v322, 2
    %v324 = vadd.f32 %v322, %v323
    %v325 = vrot.slane %v324, 1
    %v326 = vadd.f32 %v324, %v325
    %vm327 = vcmask 1040384
    %v328 = vsel %vm327, %v308, %v326
    %v329 = vadd.f32 %v284, %v328
    %v330 = vld [vmem:[#allocation4] sm:$0xff]
    %v331 = vld [vmem:[#allocation4 + $0x8] sm:$0xff]
    %334 = vst [vmem:[#allocation1] ss:$4 sm:$0xff] %v330
    %s335 = scalar_lea.vmem [#allocation1], 32
    %336 = vst [vmem:[%s335] ss:$4 sm:$0xff] %v331
    %v337 = vld.sshfl [vmem:[#allocation1] sm:$0xff pattern:$0x73625140]
    %v338 = vld.sshfl [vmem:[#allocation1 + $0x8] sm:$0xff pattern:$0x73625140]
    %v339 = vld.sshfl [vmem:[#allocation1 + $0x10] sm:$0xff pattern:$0x73625140]
    %v340 = vld.sshfl [vmem:[#allocation1 + $0x18] sm:$0xff pattern:$0x73625140]
    %v341 = vld.sshfl [vmem:[#allocation1 + $0x20] sm:$0xff pattern:$0x73625140]
    %v342 = vld.sshfl [vmem:[#allocation1 + $0x28] sm:$0xff pattern:$0x73625140]
    %v343 = vld.sshfl [vmem:[#allocation1 + $0x30] sm:$0xff pattern:$0x73625140]
    %v344 = vld.sshfl [vmem:[#allocation1 + $0x38] sm:$0xff pattern:$0x73625140]
    %v353 = vpack.c.bf16 %v337, %v337
    %v354 = vpack.c.bf16 %v338, %v338
    %v355 = vpack.c.bf16 %v339, %v339
    %v356 = vpack.c.bf16 %v340, %v340
    %v357 = vpack.c.bf16 %v341, %v341
    %v358 = vpack.c.bf16 %v342, %v342
    %v359 = vpack.c.bf16 %v343, %v343
    %v360 = vpack.c.bf16 %v344, %v344
    %v361 = vld [vmem:[#allocation9] sm:$0xf]
    %v362 = vld [vmem:[#allocation9 + $0x4] sm:$0xf]
    %v363 = vld [vmem:[#allocation9 + $0x8] sm:$0xf]
    %v364 = vld [vmem:[#allocation9 + $0xc] sm:$0xf]
    %v365 = vld [vmem:[#allocation9 + $0x10] sm:$0xf]
    %v366 = vld [vmem:[#allocation9 + $0x14] sm:$0xf]
    %v367 = vld [vmem:[#allocation9 + $0x18] sm:$0xf]
    %v368 = vld [vmem:[#allocation9 + $0x1c] sm:$0xf]
    %v369 = vld [vmem:[#allocation9 + $0x20] sm:$0xf]
    %v370 = vld [vmem:[#allocation9 + $0x24] sm:$0xf]
    %v371 = vld [vmem:[#allocation9 + $0x28] sm:$0xf]
    %v372 = vld [vmem:[#allocation9 + $0x2c] sm:$0xf]
    %v373 = vld [vmem:[#allocation9 + $0x30] sm:$0xf]
    %v374 = vld [vmem:[#allocation9 + $0x34] sm:$0xf]
    %v375 = vld [vmem:[#allocation9 + $0x38] sm:$0xf]
    %v376 = vld [vmem:[#allocation9 + $0x3c] sm:$0xf]
    %v377 = vld [vmem:[#allocation9 + $0x40] sm:$0xf]
    %v378 = vld [vmem:[#allocation9 + $0x44] sm:$0xf]
    %v379 = vld [vmem:[#allocation9 + $0x48] sm:$0xf]
    %v380 = vld [vmem:[#allocation9 + $0x4c] sm:$0xf]
    %v381 = vld [vmem:[#allocation9 + $0x50] sm:$0xf]
    %v382 = vld [vmem:[#allocation9 + $0x54] sm:$0xf]
    %v383 = vld [vmem:[#allocation9 + $0x58] sm:$0xf]
    %v384 = vld [vmem:[#allocation9 + $0x5c] sm:$0xf]
    %v385 = vld [vmem:[#allocation9 + $0x60] sm:$0xf]
    %v386 = vld [vmem:[#allocation9 + $0x64] sm:$0xf]
    %v387 = vld [vmem:[#allocation9 + $0x68] sm:$0xf]
    %v388 = vld [vmem:[#allocation9 + $0x6c] sm:$0xf]
    %v389 = vld [vmem:[#allocation9 + $0x70] sm:$0xf]
    %v390 = vld [vmem:[#allocation9 + $0x74] sm:$0xf]
    %v391 = vld [vmem:[#allocation9 + $0x78] sm:$0xf]
    %v392 = vld [vmem:[#allocation9 + $0x7c] sm:$0xf]
    %v393 = vld [vmem:[#allocation9 + $0x80] sm:$0xf]
    %v394 = vld [vmem:[#allocation9 + $0x84] sm:$0xf]
    %v395 = vld [vmem:[#allocation9 + $0x88] sm:$0xf]
    %v396 = vld [vmem:[#allocation9 + $0x8c] sm:$0xf]
    %v397 = vld [vmem:[#allocation9 + $0x90] sm:$0xf]
    %v398 = vld [vmem:[#allocation9 + $0x94] sm:$0xf]
    %v399 = vld [vmem:[#allocation9 + $0x98] sm:$0xf]
    %v400 = vld [vmem:[#allocation9 + $0x9c] sm:$0xf]
    %v401 = vld [vmem:[#allocation9 + $0xa0] sm:$0xf]
    %v402 = vld [vmem:[#allocation9 + $0xa4] sm:$0xf]
    %v403 = vld [vmem:[#allocation9 + $0xa8] sm:$0xf]
    %v404 = vld [vmem:[#allocation9 + $0xac] sm:$0xf]
    %v405 = vld [vmem:[#allocation9 + $0xb0] sm:$0xf]
    %v406 = vld [vmem:[#allocation9 + $0xb4] sm:$0xf]
    %v407 = vld [vmem:[#allocation9 + $0xb8] sm:$0xf]
    %v408 = vld [vmem:[#allocation9 + $0xbc] sm:$0xf]
    %v409 = vld [vmem:[#allocation9 + $0xc0] sm:$0xf]
    %v410 = vld [vmem:[#allocation9 + $0xc4] sm:$0xf]
    %v411 = vld [vmem:[#allocation9 + $0xc8] sm:$0xf]
    %v412 = vld [vmem:[#allocation9 + $0xcc] sm:$0xf]
    %v413 = vld [vmem:[#allocation9 + $0xd0] sm:$0xf]
    %v414 = vld [vmem:[#allocation9 + $0xd4] sm:$0xf]
    %v415 = vld [vmem:[#allocation9 + $0xd8] sm:$0xf]
    %v416 = vld [vmem:[#allocation9 + $0xdc] sm:$0xf]
    %v417 = vld [vmem:[#allocation9 + $0xe0] sm:$0xf]
    %v418 = vld [vmem:[#allocation9 + $0xe4] sm:$0xf]
    %v419 = vld [vmem:[#allocation9 + $0xe8] sm:$0xf]
    %v420 = vld [vmem:[#allocation9 + $0xec] sm:$0xf]
    %v421 = vld [vmem:[#allocation9 + $0xf0] sm:$0xf]
    %v422 = vld [vmem:[#allocation9 + $0xf4] sm:$0xf]
    %v423 = vld [vmem:[#allocation9 + $0xf8] sm:$0xf]
    %v424 = vld [vmem:[#allocation9 + $0xfc] sm:$0xf]
    %v425 = vld [vmem:[#allocation9 + $0x100] sm:$0xf]
    %v426 = vld [vmem:[#allocation9 + $0x104] sm:$0xf]
    %v427 = vld [vmem:[#allocation9 + $0x108] sm:$0xf]
    %v428 = vld [vmem:[#allocation9 + $0x10c] sm:$0xf]
    %v429 = vld [vmem:[#allocation9 + $0x110] sm:$0xf]
    %v430 = vld [vmem:[#allocation9 + $0x114] sm:$0xf]
    %v431 = vld [vmem:[#allocation9 + $0x118] sm:$0xf]
    %v432 = vld [vmem:[#allocation9 + $0x11c] sm:$0xf]
    %v433 = vld [vmem:[#allocation9 + $0x120] sm:$0xf]
    %v434 = vld [vmem:[#allocation9 + $0x124] sm:$0xf]
    %v435 = vld [vmem:[#allocation9 + $0x128] sm:$0xf]
    %v436 = vld [vmem:[#allocation9 + $0x12c] sm:$0xf]
    %v437 = vld [vmem:[#allocation9 + $0x130] sm:$0xf]
    %v438 = vld [vmem:[#allocation9 + $0x134] sm:$0xf]
    %v439 = vld [vmem:[#allocation9 + $0x138] sm:$0xf]
    %v440 = vld [vmem:[#allocation9 + $0x13c] sm:$0xf]
    %v441 = vld [vmem:[#allocation9 + $0x140] sm:$0xf]
    %v442 = vld [vmem:[#allocation9 + $0x144] sm:$0xf]
    %v443 = vld [vmem:[#allocation9 + $0x148] sm:$0xf]
    %v444 = vld [vmem:[#allocation9 + $0x14c] sm:$0xf]
    %v445 = vld [vmem:[#allocation9 + $0x150] sm:$0xf]
    %v446 = vld [vmem:[#allocation9 + $0x154] sm:$0xf]
    %v447 = vld [vmem:[#allocation9 + $0x158] sm:$0xf]
    %v448 = vld [vmem:[#allocation9 + $0x15c] sm:$0xf]
    %v449 = vld [vmem:[#allocation9 + $0x160] sm:$0xf]
    %v450 = vld [vmem:[#allocation9 + $0x164] sm:$0xf]
    %v451 = vld [vmem:[#allocation9 + $0x168] sm:$0xf]
    %v452 = vld [vmem:[#allocation9 + $0x16c] sm:$0xf]
    %v453 = vld [vmem:[#allocation9 + $0x170] sm:$0xf]
    %v454 = vld [vmem:[#allocation9 + $0x174] sm:$0xf]
    %v455 = vld [vmem:[#allocation9 + $0x178] sm:$0xf]
    %v456 = vld [vmem:[#allocation9 + $0x17c] sm:$0xf]
    %v457 = vld [vmem:[#allocation9 + $0x180] sm:$0xf]
    %v458 = vld [vmem:[#allocation9 + $0x184] sm:$0xf]
    %v459 = vld [vmem:[#allocation9 + $0x188] sm:$0xf]
    %v460 = vld [vmem:[#allocation9 + $0x18c] sm:$0xf]
    %v461 = vld [vmem:[#allocation9 + $0x190] sm:$0xf]
    %v462 = vld [vmem:[#allocation9 + $0x194] sm:$0xf]
    %v463 = vld [vmem:[#allocation9 + $0x198] sm:$0xf]
    %v464 = vld [vmem:[#allocation9 + $0x19c] sm:$0xf]
    %v465 = vld [vmem:[#allocation9 + $0x1a0] sm:$0xf]
    %v466 = vld [vmem:[#allocation9 + $0x1a4] sm:$0xf]
    %v467 = vld [vmem:[#allocation9 + $0x1a8] sm:$0xf]
    %v468 = vld [vmem:[#allocation9 + $0x1ac] sm:$0xf]
    %v469 = vld [vmem:[#allocation9 + $0x1b0] sm:$0xf]
    %v470 = vld [vmem:[#allocation9 + $0x1b4] sm:$0xf]
    %v471 = vld [vmem:[#allocation9 + $0x1b8] sm:$0xf]
    %v472 = vld [vmem:[#allocation9 + $0x1bc] sm:$0xf]
    %v473 = vld [vmem:[#allocation9 + $0x1c0] sm:$0xf]
    %v474 = vld [vmem:[#allocation9 + $0x1c4] sm:$0xf]
    %v475 = vld [vmem:[#allocation9 + $0x1c8] sm:$0xf]
    %v476 = vld [vmem:[#allocation9 + $0x1cc] sm:$0xf]
    %v477 = vld [vmem:[#allocation9 + $0x1d0] sm:$0xf]
    %v478 = vld [vmem:[#allocation9 + $0x1d4] sm:$0xf]
    %v479 = vld [vmem:[#allocation9 + $0x1d8] sm:$0xf]
    %v480 = vld [vmem:[#allocation9 + $0x1dc] sm:$0xf]
    %v481 = vld [vmem:[#allocation9 + $0x1e0] sm:$0xf]
    %v482 = vld [vmem:[#allocation9 + $0x1e4] sm:$0xf]
    %v483 = vld [vmem:[#allocation9 + $0x1e8] sm:$0xf]
    %v484 = vld [vmem:[#allocation9 + $0x1ec] sm:$0xf]
    %v485 = vld [vmem:[#allocation9 + $0x1f0] sm:$0xf]
    %v486 = vld [vmem:[#allocation9 + $0x1f4] sm:$0xf]
    %v487 = vld [vmem:[#allocation9 + $0x1f8] sm:$0xf]
    %v488 = vld [vmem:[#allocation9 + $0x1fc] sm:$0xf]
    %v489 = vpack.c.bf16 %v329, %v329
    %v490 = vld [vmem:[#allocation10] sm:$0xf]
    %v491 = vld [vmem:[#allocation10 + $0x4] sm:$0xf]
    %v492 = vld [vmem:[#allocation10 + $0x8] sm:$0xf]
    %v493 = vld [vmem:[#allocation10 + $0xc] sm:$0xf]
    %v494 = vld [vmem:[#allocation10 + $0x10] sm:$0xf]
    %v495 = vld [vmem:[#allocation10 + $0x14] sm:$0xf]
    %v496 = vld [vmem:[#allocation10 + $0x18] sm:$0xf]
    %v497 = vld [vmem:[#allocation10 + $0x1c] sm:$0xf]
    %v498 = vld [vmem:[#allocation10 + $0x20] sm:$0xf]
    %v499 = vld [vmem:[#allocation10 + $0x24] sm:$0xf]
    %v500 = vld [vmem:[#allocation10 + $0x28] sm:$0xf]
    %v501 = vld [vmem:[#allocation10 + $0x2c] sm:$0xf]
    %v502 = vld [vmem:[#allocation10 + $0x30] sm:$0xf]
    %v503 = vld [vmem:[#allocation10 + $0x34] sm:$0xf]
    %v504 = vld [vmem:[#allocation10 + $0x38] sm:$0xf]
    %v505 = vld [vmem:[#allocation10 + $0x3c] sm:$0xf]
    %v522 = vunpack.c.l.b16 %v490
    %v523 = vunpack.c.l.b16 %v491
    %v524 = vunpack.c.l.b16 %v492
    %v525 = vunpack.c.l.b16 %v493
    %v526 = vunpack.c.l.b16 %v494
    %v527 = vunpack.c.l.b16 %v495
    %v528 = vunpack.c.l.b16 %v496
    %v529 = vunpack.c.l.b16 %v497
    %v530 = vunpack.c.l.b16 %v498
    %v531 = vunpack.c.l.b16 %v499
    %v532 = vunpack.c.l.b16 %v500
    %v533 = vunpack.c.l.b16 %v501
    %v534 = vunpack.c.l.b16 %v502
    %v535 = vunpack.c.l.b16 %v503
    %v536 = vunpack.c.l.b16 %v504
    %v537 = vunpack.c.l.b16 %v505
    %v538 = vpack.c.b16 %v523, %v522
    %v539 = vpack.c.b16 %v525, %v524
    %v540 = vpack.c.b16 %v527, %v526
    %v541 = vpack.c.b16 %v529, %v528
    %v542 = vpack.c.b16 %v531, %v530
    %v543 = vpack.c.b16 %v533, %v532
    %v544 = vpack.c.b16 %v535, %v534
    %v545 = vpack.c.b16 %v537, %v536
    %554 = vmatpush.bf16.msra.mxu0 %v545
    %555 = vmatpush.bf16.msra.mxu0 %v544
    %556 = vmatpush.bf16.msra.mxu0 %v543
    %557 = vmatpush.bf16.msra.mxu0 %v542
    %558 = vmatpush.bf16.msra.mxu0 %v541
    %559 = vmatpush.bf16.msra.mxu0 %v540
    %560 = vmatpush.bf16.msra.mxu0 %v539
    %561 = vmatpush.bf16.msra.mxu0 %v538
    %562 = vmatmul.bf16.gmra.mxu0 %v489
    %v563 = vpop.f32.mrf.mxu0
    %v564 = vadd.f32 0.0, %v563
    %v565 = vpop.f32.mrf.mxu0
    %566 = vdwg.mxu0
    %v695 = vunpack.c.l.b16 %v361
    %v696 = vunpack.c.l.b16 %v362
    %v697 = vunpack.c.l.b16 %v363
    %v698 = vunpack.c.l.b16 %v364
    %v699 = vunpack.c.l.b16 %v365
    %v700 = vunpack.c.l.b16 %v366
    %v701 = vunpack.c.l.b16 %v367
    %v702 = vunpack.c.l.b16 %v368
    %v703 = vunpack.c.l.b16 %v369
    %v704 = vunpack.c.l.b16 %v370
    %v705 = vunpack.c.l.b16 %v371
    %v706 = vunpack.c.l.b16 %v372
    %v707 = vunpack.c.l.b16 %v373
    %v708 = vunpack.c.l.b16 %v374
    %v709 = vunpack.c.l.b16 %v375
    %v710 = vunpack.c.l.b16 %v376
    %v711 = vunpack.c.l.b16 %v377
    %v712 = vunpack.c.l.b16 %v378
    %v713 = vunpack.c.l.b16 %v379
    %v714 = vunpack.c.l.b16 %v380
    %v715 = vunpack.c.l.b16 %v381
    %v716 = vunpack.c.l.b16 %v382
    %v717 = vunpack.c.l.b16 %v383
    %v718 = vunpack.c.l.b16 %v384
    %v719 = vunpack.c.l.b16 %v385
    %v720 = vunpack.c.l.b16 %v386
    %v721 = vunpack.c.l.b16 %v387
    %v722 = vunpack.c.l.b16 %v388
    %v723 = vunpack.c.l.b16 %v389
    %v724 = vunpack.c.l.b16 %v390
    %v725 = vunpack.c.l.b16 %v391
    %v726 = vunpack.c.l.b16 %v392
    %v727 = vunpack.c.l.b16 %v393
    %v728 = vunpack.c.l.b16 %v394
    %v729 = vunpack.c.l.b16 %v395
    %v730 = vunpack.c.l.b16 %v396
    %v731 = vunpack.c.l.b16 %v397
    %v732 = vunpack.c.l.b16 %v398
    %v733 = vunpack.c.l.b16 %v399
    %v734 = vunpack.c.l.b16 %v400
    %v735 = vunpack.c.l.b16 %v401
    %v736 = vunpack.c.l.b16 %v402
    %v737 = vunpack.c.l.b16 %v403
    %v738 = vunpack.c.l.b16 %v404
    %v739 = vunpack.c.l.b16 %v405
    %v740 = vunpack.c.l.b16 %v406
    %v741 = vunpack.c.l.b16 %v407
    %v742 = vunpack.c.l.b16 %v408
    %v743 = vunpack.c.l.b16 %v409
    %v744 = vunpack.c.l.b16 %v410
    %v745 = vunpack.c.l.b16 %v411
    %v746 = vunpack.c.l.b16 %v412
    %v747 = vunpack.c.l.b16 %v413
    %v748 = vunpack.c.l.b16 %v414
    %v749 = vunpack.c.l.b16 %v415
    %v750 = vunpack.c.l.b16 %v416
    %v751 = vunpack.c.l.b16 %v417
    %v752 = vunpack.c.l.b16 %v418
    %v753 = vunpack.c.l.b16 %v419
    %v754 = vunpack.c.l.b16 %v420
    %v755 = vunpack.c.l.b16 %v421
    %v756 = vunpack.c.l.b16 %v422
    %v757 = vunpack.c.l.b16 %v423
    %v758 = vunpack.c.l.b16 %v424
    %v759 = vunpack.c.l.b16 %v425
    %v760 = vunpack.c.l.b16 %v426
    %v761 = vunpack.c.l.b16 %v427
    %v762 = vunpack.c.l.b16 %v428
    %v763 = vunpack.c.l.b16 %v429
    %v764 = vunpack.c.l.b16 %v430
    %v765 = vunpack.c.l.b16 %v431
    %v766 = vunpack.c.l.b16 %v432
    %v767 = vunpack.c.l.b16 %v433
    %v768 = vunpack.c.l.b16 %v434
    %v769 = vunpack.c.l.b16 %v435
    %v770 = vunpack.c.l.b16 %v436
    %v771 = vunpack.c.l.b16 %v437
    %v772 = vunpack.c.l.b16 %v438
    %v773 = vunpack.c.l.b16 %v439
    %v774 = vunpack.c.l.b16 %v440
    %v775 = vunpack.c.l.b16 %v441
    %v776 = vunpack.c.l.b16 %v442
    %v777 = vunpack.c.l.b16 %v443
    %v778 = vunpack.c.l.b16 %v444
    %v779 = vunpack.c.l.b16 %v445
    %v780 = vunpack.c.l.b16 %v446
    %v781 = vunpack.c.l.b16 %v447
    %v782 = vunpack.c.l.b16 %v448
    %v783 = vunpack.c.l.b16 %v449
    %v784 = vunpack.c.l.b16 %v450
    %v785 = vunpack.c.l.b16 %v451
    %v786 = vunpack.c.l.b16 %v452
    %v787 = vunpack.c.l.b16 %v453
    %v788 = vunpack.c.l.b16 %v454
    %v789 = vunpack.c.l.b16 %v455
    %v790 = vunpack.c.l.b16 %v456
    %v791 = vunpack.c.l.b16 %v457
    %v792 = vunpack.c.l.b16 %v458
    %v793 = vunpack.c.l.b16 %v459
    %v794 = vunpack.c.l.b16 %v460
    %v795 = vunpack.c.l.b16 %v461
    %v796 = vunpack.c.l.b16 %v462
    %v797 = vunpack.c.l.b16 %v463
    %v798 = vunpack.c.l.b16 %v464
    %v799 = vunpack.c.l.b16 %v465
    %v800 = vunpack.c.l.b16 %v466
    %v801 = vunpack.c.l.b16 %v467
    %v802 = vunpack.c.l.b16 %v468
    %v803 = vunpack.c.l.b16 %v469
    %v804 = vunpack.c.l.b16 %v470
    %v805 = vunpack.c.l.b16 %v471
    %v806 = vunpack.c.l.b16 %v472
    %v807 = vunpack.c.l.b16 %v473
    %v808 = vunpack.c.l.b16 %v474
    %v809 = vunpack.c.l.b16 %v475
    %v810 = vunpack.c.l.b16 %v476
    %v811 = vunpack.c.l.b16 %v477
    %v812 = vunpack.c.l.b16 %v478
    %v813 = vunpack.c.l.b16 %v479
    %v814 = vunpack.c.l.b16 %v480
    %v815 = vunpack.c.l.b16 %v481
    %v816 = vunpack.c.l.b16 %v482
    %v817 = vunpack.c.l.b16 %v483
    %v818 = vunpack.c.l.b16 %v484
    %v819 = vunpack.c.l.b16 %v485
    %v820 = vunpack.c.l.b16 %v486
    %v821 = vunpack.c.l.b16 %v487
    %v822 = vunpack.c.l.b16 %v488
    %v823 = vpack.c.b16 %v696, %v695
    %v824 = vpack.c.b16 %v698, %v697
    %v825 = vpack.c.b16 %v700, %v699
    %v826 = vpack.c.b16 %v702, %v701
    %v827 = vpack.c.b16 %v704, %v703
    %v828 = vpack.c.b16 %v706, %v705
    %v829 = vpack.c.b16 %v708, %v707
    %v830 = vpack.c.b16 %v710, %v709
    %v831 = vpack.c.b16 %v712, %v711
    %v832 = vpack.c.b16 %v714, %v713
    %v833 = vpack.c.b16 %v716, %v715
    %v834 = vpack.c.b16 %v718, %v717
    %v835 = vpack.c.b16 %v720, %v719
    %v836 = vpack.c.b16 %v722, %v721
    %v837 = vpack.c.b16 %v724, %v723
    %v838 = vpack.c.b16 %v726, %v725
    %v839 = vpack.c.b16 %v728, %v727
    %v840 = vpack.c.b16 %v730, %v729
    %v841 = vpack.c.b16 %v732, %v731
    %v842 = vpack.c.b16 %v734, %v733
    %v843 = vpack.c.b16 %v736, %v735
    %v844 = vpack.c.b16 %v738, %v737
    %v845 = vpack.c.b16 %v740, %v739
    %v846 = vpack.c.b16 %v742, %v741
    %v847 = vpack.c.b16 %v744, %v743
    %v848 = vpack.c.b16 %v746, %v745
    %v849 = vpack.c.b16 %v748, %v747
    %v850 = vpack.c.b16 %v750, %v749
    %v851 = vpack.c.b16 %v752, %v751
    %v852 = vpack.c.b16 %v754, %v753
    %v853 = vpack.c.b16 %v756, %v755
    %v854 = vpack.c.b16 %v758, %v757
    %v855 = vpack.c.b16 %v760, %v759
    %v856 = vpack.c.b16 %v762, %v761
    %v857 = vpack.c.b16 %v764, %v763
    %v858 = vpack.c.b16 %v766, %v765
    %v859 = vpack.c.b16 %v768, %v767
    %v860 = vpack.c.b16 %v770, %v769
    %v861 = vpack.c.b16 %v772, %v771
    %v862 = vpack.c.b16 %v774, %v773
    %v863 = vpack.c.b16 %v776, %v775
    %v864 = vpack.c.b16 %v778, %v777
    %v865 = vpack.c.b16 %v780, %v779
    %v866 = vpack.c.b16 %v782, %v781
    %v867 = vpack.c.b16 %v784, %v783
    %v868 = vpack.c.b16 %v786, %v785
    %v869 = vpack.c.b16 %v788, %v787
    %v870 = vpack.c.b16 %v790, %v789
    %v871 = vpack.c.b16 %v792, %v791
    %v872 = vpack.c.b16 %v794, %v793
    %v873 = vpack.c.b16 %v796, %v795
    %v874 = vpack.c.b16 %v798, %v797
    %v875 = vpack.c.b16 %v800, %v799
    %v876 = vpack.c.b16 %v802, %v801
    %v877 = vpack.c.b16 %v804, %v803
    %v878 = vpack.c.b16 %v806, %v805
    %v879 = vpack.c.b16 %v808, %v807
    %v880 = vpack.c.b16 %v810, %v809
    %v881 = vpack.c.b16 %v812, %v811
    %v882 = vpack.c.b16 %v814, %v813
    %v883 = vpack.c.b16 %v816, %v815
    %v884 = vpack.c.b16 %v818, %v817
    %v885 = vpack.c.b16 %v820, %v819
    %v886 = vpack.c.b16 %v822, %v821
    %951 = vmatpush.bf16.msra.mxu0 %v830
    %952 = vmatpush.bf16.msra.mxu0 %v829
    %953 = vmatpush.bf16.msra.mxu0 %v828
    %954 = vmatpush.bf16.msra.mxu0 %v827
    %955 = vmatpush.bf16.msra.mxu0 %v826
    %956 = vmatpush.bf16.msra.mxu0 %v825
    %957 = vmatpush.bf16.msra.mxu0 %v824
    %958 = vmatpush.bf16.msra.mxu0 %v823
    %959 = vmatmul.bf16.gmra.mxu0 %v353
    %v960 = vpop.f32.mrf.mxu0
    %v961 = vadd.f32 %v564, %v960
    %v962 = vpop.f32.mrf.mxu0
    %963 = vdwg.mxu0
    %964 = vmatpush.bf16.msra.mxu0 %v838
    %965 = vmatpush.bf16.msra.mxu0 %v837
    %966 = vmatpush.bf16.msra.mxu0 %v836
    %967 = vmatpush.bf16.msra.mxu0 %v835
    %968 = vmatpush.bf16.msra.mxu0 %v834
    %969 = vmatpush.bf16.msra.mxu0 %v833
    %970 = vmatpush.bf16.msra.mxu0 %v832
    %971 = vmatpush.bf16.msra.mxu0 %v831
    %972 = vmatmul.bf16.gmra.mxu0 %v354
    %v973 = vpop.f32.mrf.mxu0
    %v974 = vadd.f32 %v961, %v973
    %v975 = vpop.f32.mrf.mxu0
    %976 = vdwg.mxu0
    %977 = vmatpush.bf16.msra.mxu0 %v846
    %978 = vmatpush.bf16.msra.mxu0 %v845
    %979 = vmatpush.bf16.msra.mxu0 %v844
    %980 = vmatpush.bf16.msra.mxu0 %v843
    %981 = vmatpush.bf16.msra.mxu0 %v842
    %982 = vmatpush.bf16.msra.mxu0 %v841
    %983 = vmatpush.bf16.msra.mxu0 %v840
    %984 = vmatpush.bf16.msra.mxu0 %v839
    %985 = vmatmul.bf16.gmra.mxu0 %v355
    %v986 = vpop.f32.mrf.mxu0
    %v987 = vadd.f32 %v974, %v986
    %v988 = vpop.f32.mrf.mxu0
    %989 = vdwg.mxu0
    %990 = vmatpush.bf16.msra.mxu0 %v854
    %991 = vmatpush.bf16.msra.mxu0 %v853
    %992 = vmatpush.bf16.msra.mxu0 %v852
    %993 = vmatpush.bf16.msra.mxu0 %v851
    %994 = vmatpush.bf16.msra.mxu0 %v850
    %995 = vmatpush.bf16.msra.mxu0 %v849
    %996 = vmatpush.bf16.msra.mxu0 %v848
    %997 = vmatpush.bf16.msra.mxu0 %v847
    %998 = vmatmul.bf16.gmra.mxu0 %v356
    %v999 = vpop.f32.mrf.mxu0
    %v1000 = vadd.f32 %v987, %v999
    %v1001 = vpop.f32.mrf.mxu0
    %1002 = vdwg.mxu0
    %1003 = vmatpush.bf16.msra.mxu0 %v862
    %1004 = vmatpush.bf16.msra.mxu0 %v861
    %1005 = vmatpush.bf16.msra.mxu0 %v860
    %1006 = vmatpush.bf16.msra.mxu0 %v859
    %1007 = vmatpush.bf16.msra.mxu0 %v858
    %1008 = vmatpush.bf16.msra.mxu0 %v857
    %1009 = vmatpush.bf16.msra.mxu0 %v856
    %1010 = vmatpush.bf16.msra.mxu0 %v855
    %1011 = vmatmul.bf16.gmra.mxu0 %v357
    %v1012 = vpop.f32.mrf.mxu0
    %v1013 = vadd.f32 %v1000, %v1012
    %v1014 = vpop.f32.mrf.mxu0
    %1015 = vdwg.mxu0
    %1016 = vmatpush.bf16.msra.mxu0 %v870
    %1017 = vmatpush.bf16.msra.mxu0 %v869
    %1018 = vmatpush.bf16.msra.mxu0 %v868
    %1019 = vmatpush.bf16.msra.mxu0 %v867
    %1020 = vmatpush.bf16.msra.mxu0 %v866
    %1021 = vmatpush.bf16.msra.mxu0 %v865
    %1022 = vmatpush.bf16.msra.mxu0 %v864
    %1023 = vmatpush.bf16.msra.mxu0 %v863
    %1024 = vmatmul.bf16.gmra.mxu0 %v358
    %v1025 = vpop.f32.mrf.mxu0
    %v1026 = vadd.f32 %v1013, %v1025
    %v1027 = vpop.f32.mrf.mxu0
    %1028 = vdwg.mxu0
    %1029 = vmatpush.bf16.msra.mxu0 %v878
    %1030 = vmatpush.bf16.msra.mxu0 %v877
    %1031 = vmatpush.bf16.msra.mxu0 %v876
    %1032 = vmatpush.bf16.msra.mxu0 %v875
    %1033 = vmatpush.bf16.msra.mxu0 %v874
    %1034 = vmatpush.bf16.msra.mxu0 %v873
    %1035 = vmatpush.bf16.msra.mxu0 %v872
    %1036 = vmatpush.bf16.msra.mxu0 %v871
    %1037 = vmatmul.bf16.gmra.mxu0 %v359
    %v1038 = vpop.f32.mrf.mxu0
    %v1039 = vadd.f32 %v1026, %v1038
    %v1040 = vpop.f32.mrf.mxu0
    %1041 = vdwg.mxu0
    %1042 = vmatpush.bf16.msra.mxu0 %v886
    %1043 = vmatpush.bf16.msra.mxu0 %v885
    %1044 = vmatpush.bf16.msra.mxu0 %v884
    %1045 = vmatpush.bf16.msra.mxu0 %v883
    %1046 = vmatpush.bf16.msra.mxu0 %v882
    %1047 = vmatpush.bf16.msra.mxu0 %v881
    %1048 = vmatpush.bf16.msra.mxu0 %v880
    %1049 = vmatpush.bf16.msra.mxu0 %v879
    %1050 = vmatmul.bf16.gmra.mxu0 %v360
    %v1051 = vpop.f32.mrf.mxu0
    %v1052 = vadd.f32 %v1039, %v1051
    %v1053 = vpop.f32.mrf.mxu0
    %1054 = vdwg.mxu0
    %v1055 = vld [vmem:[%s7] sm:$0x1]
    %v1057 = vperm.slane %v1055, 0
    %v1059 = vadd.f32 %v1052, %v1057
    %v1060 = vxor.u32 %v1059, 2147483648
    %v1061 = vmul.f32 %v1060, 1.442695
    %v1062 = vpow.pop %v1061
    %v1063 = vadd.f32 %v1062, 1.0
    %v1064 = vrcp.pop %v1063
    %v1065 = vmul.f32 %v1063, %v1064
    %v1066 = vsub.f32 1.0, %v1065
    %v1067 = vmul.f32 %v1064, %v1066
    %v1068 = vadd.f32 %v1064, %v1067
    %vm1069 = vweird.f32 %v1063
    %vm1070 = vweird.f32 %v1064
    %vm1071 = vmor %vm1069, %vm1070
    %v1072 = vsel %vm1071, %v1064, %v1068
    %v1073 = vand.u32 2147483647, %v1063
    %vm1074 = vcmp.eq.f32.partialorder %v1073, 8.507059e+37
    %v1075 = vand.u32 %v1063, 2147483648
    %v1076 = vor.u32 1.1754944e-38, %v1075
    %v1077 = vsel %vm1074, %v1076, %v1072
    %v1078 = vmul.f32 1.0, %v1077
    %v1079 = vmul.f32 %v1059, %v1078
    %v1080 = vpack.c.bf16 %v1079, %v1079
    %v1081 = vld [vmem:[#allocation12] sm:$0xff]
    %v1082 = vld [vmem:[#allocation12 + $0x8] sm:$0xff]
    %v1083 = vld [vmem:[#allocation12 + $0x10] sm:$0xff]
    %v1084 = vld [vmem:[#allocation12 + $0x18] sm:$0xff]
    %v1085 = vld [vmem:[#allocation12 + $0x20] sm:$0xff]
    %v1086 = vld [vmem:[#allocation12 + $0x28] sm:$0xff]
    %v1087 = vld [vmem:[#allocation12 + $0x30] sm:$0xff]
    %v1088 = vld [vmem:[#allocation12 + $0x38] sm:$0xff]
    %v1089 = vld [vmem:[#allocation12 + $0x40] sm:$0xff]
    %v1090 = vld [vmem:[#allocation12 + $0x48] sm:$0xff]
    %v1091 = vld [vmem:[#allocation12 + $0x50] sm:$0xff]
    %v1092 = vld [vmem:[#allocation12 + $0x58] sm:$0xff]
    %v1093 = vld [vmem:[#allocation12 + $0x60] sm:$0xff]
    %v1094 = vld [vmem:[#allocation12 + $0x68] sm:$0xff]
    %v1095 = vld [vmem:[#allocation12 + $0x70] sm:$0xff]
    %v1096 = vld [vmem:[#allocation12 + $0x78] sm:$0xff]
    %v1097 = vld [vmem:[#allocation12 + $0x80] sm:$0xff]
    %v1098 = vld [vmem:[#allocation12 + $0x88] sm:$0xff]
    %v1099 = vld [vmem:[#allocation12 + $0x90] sm:$0xff]
    %v1100 = vld [vmem:[#allocation12 + $0x98] sm:$0xff]
    %v1101 = vld [vmem:[#allocation12 + $0xa0] sm:$0xff]
    %v1102 = vld [vmem:[#allocation12 + $0xa8] sm:$0xff]
    %v1103 = vld [vmem:[#allocation12 + $0xb0] sm:$0xff]
    %v1104 = vld [vmem:[#allocation12 + $0xb8] sm:$0xff]
    %v1105 = vld [vmem:[#allocation12 + $0xc0] sm:$0xff]
    %v1106 = vld [vmem:[#allocation12 + $0xc8] sm:$0xff]
    %v1107 = vld [vmem:[#allocation12 + $0xd0] sm:$0xff]
    %v1108 = vld [vmem:[#allocation12 + $0xd8] sm:$0xff]
    %v1109 = vld [vmem:[#allocation12 + $0xe0] sm:$0xff]
    %v1110 = vld [vmem:[#allocation12 + $0xe8] sm:$0xff]
    %v1111 = vld [vmem:[#allocation12 + $0xf0] sm:$0xff]
    %v1112 = vld [vmem:[#allocation12 + $0xf8] sm:$0xff]
    %v1113 = vld [vmem:[#allocation12 + $0x100] sm:$0xff]
    %v1114 = vld [vmem:[#allocation12 + $0x108] sm:$0xff]
    %v1115 = vld [vmem:[#allocation12 + $0x110] sm:$0xff]
    %v1116 = vld [vmem:[#allocation12 + $0x118] sm:$0xff]
    %v1117 = vld [vmem:[#allocation12 + $0x120] sm:$0xff]
    %v1118 = vld [vmem:[#allocation12 + $0x128] sm:$0xff]
    %v1119 = vld [vmem:[#allocation12 + $0x130] sm:$0xff]
    %v1120 = vld [vmem:[#allocation12 + $0x138] sm:$0xff]
    %v1121 = vld [vmem:[#allocation12 + $0x140] sm:$0xff]
    %v1122 = vld [vmem:[#allocation12 + $0x148] sm:$0xff]
    %v1123 = vld [vmem:[#allocation12 + $0x150] sm:$0xff]
    %v1124 = vld [vmem:[#allocation12 + $0x158] sm:$0xff]
    %v1125 = vld [vmem:[#allocation12 + $0x160] sm:$0xff]
    %v1126 = vld [vmem:[#allocation12 + $0x168] sm:$0xff]
    %v1127 = vld [vmem:[#allocation12 + $0x170] sm:$0xff]
    %v1128 = vld [vmem:[#allocation12 + $0x178] sm:$0xff]
    %v1129 = vld [vmem:[#allocation12 + $0x180] sm:$0xff]
    %v1130 = vld [vmem:[#allocation12 + $0x188] sm:$0xff]
    %v1131 = vld [vmem:[#allocation12 + $0x190] sm:$0xff]
    %v1132 = vld [vmem:[#allocation12 + $0x198] sm:$0xff]
    %v1133 = vld [vmem:[#allocation12 + $0x1a0] sm:$0xff]
    %v1134 = vld [vmem:[#allocation12 + $0x1a8] sm:$0xff]
    %v1135 = vld [vmem:[#allocation12 + $0x1b0] sm:$0xff]
    %v1136 = vld [vmem:[#allocation12 + $0x1b8] sm:$0xff]
    %v1137 = vld [vmem:[#allocation12 + $0x1c0] sm:$0xff]
    %v1138 = vld [vmem:[#allocation12 + $0x1c8] sm:$0xff]
    %v1139 = vld [vmem:[#allocation12 + $0x1d0] sm:$0xff]
    %v1140 = vld [vmem:[#allocation12 + $0x1d8] sm:$0xff]
    %v1141 = vld [vmem:[#allocation12 + $0x1e0] sm:$0xff]
    %v1142 = vld [vmem:[#allocation12 + $0x1e8] sm:$0xff]
    %v1143 = vld [vmem:[#allocation12 + $0x1f0] sm:$0xff]
    %v1144 = vld [vmem:[#allocation12 + $0x1f8] sm:$0xff]
    %v1145 = vld [vmem:[%s9] sm:$0xff]
    %v1147 = vperm.slane %v1145, 0
    %v1148 = vperm.slane %v1145, 1
    %v1149 = vperm.slane %v1145, 2
    %v1150 = vperm.slane %v1145, 3
    %v1151 = vperm.slane %v1145, 4
    %v1152 = vperm.slane %v1145, 5
    %v1153 = vperm.slane %v1145, 6
    %v1154 = vperm.slane %v1145, 7
    %v1227 = vunpack.c.l.b16 %v1081
    %v1228 = vunpack.c.h.b16 %v1081
    %v1229 = vunpack.c.l.b16 %v1082
    %v1230 = vunpack.c.h.b16 %v1082
    %v1231 = vunpack.c.l.b16 %v1083
    %v1232 = vunpack.c.h.b16 %v1083
    %v1233 = vunpack.c.l.b16 %v1084
    %v1234 = vunpack.c.h.b16 %v1084
    %v1235 = vunpack.c.l.b16 %v1085
    %v1236 = vunpack.c.h.b16 %v1085
    %v1237 = vunpack.c.l.b16 %v1086
    %v1238 = vunpack.c.h.b16 %v1086
    %v1239 = vunpack.c.l.b16 %v1087
    %v1240 = vunpack.c.h.b16 %v1087
    %v1241 = vunpack.c.l.b16 %v1088
    %v1242 = vunpack.c.h.b16 %v1088
    %v1243 = vunpack.c.l.b16 %v1089
    %v1244 = vunpack.c.h.b16 %v1089
    %v1245 = vunpack.c.l.b16 %v1090
    %v1246 = vunpack.c.h.b16 %v1090
    %v1247 = vunpack.c.l.b16 %v1091
    %v1248 = vunpack.c.h.b16 %v1091
    %v1249 = vunpack.c.l.b16 %v1092
    %v1250 = vunpack.c.h.b16 %v1092
    %v1251 = vunpack.c.l.b16 %v1093
    %v1252 = vunpack.c.h.b16 %v1093
    %v1253 = vunpack.c.l.b16 %v1094
    %v1254 = vunpack.c.h.b16 %v1094
    %v1255 = vunpack.c.l.b16 %v1095
    %v1256 = vunpack.c.h.b16 %v1095
    %v1257 = vunpack.c.l.b16 %v1096
    %v1258 = vunpack.c.h.b16 %v1096
    %v1259 = vunpack.c.l.b16 %v1097
    %v1260 = vunpack.c.h.b16 %v1097
    %v1261 = vunpack.c.l.b16 %v1098
    %v1262 = vunpack.c.h.b16 %v1098
    %v1263 = vunpack.c.l.b16 %v1099
    %v1264 = vunpack.c.h.b16 %v1099
    %v1265 = vunpack.c.l.b16 %v1100
    %v1266 = vunpack.c.h.b16 %v1100
    %v1267 = vunpack.c.l.b16 %v1101
    %v1268 = vunpack.c.h.b16 %v1101
    %v1269 = vunpack.c.l.b16 %v1102
    %v1270 = vunpack.c.h.b16 %v1102
    %v1271 = vunpack.c.l.b16 %v1103
    %v1272 = vunpack.c.h.b16 %v1103
    %v1273 = vunpack.c.l.b16 %v1104
    %v1274 = vunpack.c.h.b16 %v1104
    %v1275 = vunpack.c.l.b16 %v1105
    %v1276 = vunpack.c.h.b16 %v1105
    %v1277 = vunpack.c.l.b16 %v1106
    %v1278 = vunpack.c.h.b16 %v1106
    %v1279 = vunpack.c.l.b16 %v1107
    %v1280 = vunpack.c.h.b16 %v1107
    %v1281 = vunpack.c.l.b16 %v1108
    %v1282 = vunpack.c.h.b16 %v1108
    %v1283 = vunpack.c.l.b16 %v1109
    %v1284 = vunpack.c.h.b16 %v1109
    %v1285 = vunpack.c.l.b16 %v1110
    %v1286 = vunpack.c.h.b16 %v1110
    %v1287 = vunpack.c.l.b16 %v1111
    %v1288 = vunpack.c.h.b16 %v1111
    %v1289 = vunpack.c.l.b16 %v1112
    %v1290 = vunpack.c.h.b16 %v1112
    %v1291 = vunpack.c.l.b16 %v1113
    %v1292 = vunpack.c.h.b16 %v1113
    %v1293 = vunpack.c.l.b16 %v1114
    %v1294 = vunpack.c.h.b16 %v1114
    %v1295 = vunpack.c.l.b16 %v1115
    %v1296 = vunpack.c.h.b16 %v1115
    %v1297 = vunpack.c.l.b16 %v1116
    %v1298 = vunpack.c.h.b16 %v1116
    %v1299 = vunpack.c.l.b16 %v1117
    %v1300 = vunpack.c.h.b16 %v1117
    %v1301 = vunpack.c.l.b16 %v1118
    %v1302 = vunpack.c.h.b16 %v1118
    %v1303 = vunpack.c.l.b16 %v1119
    %v1304 = vunpack.c.h.b16 %v1119
    %v1305 = vunpack.c.l.b16 %v1120
    %v1306 = vunpack.c.h.b16 %v1120
    %v1307 = vunpack.c.l.b16 %v1121
    %v1308 = vunpack.c.h.b16 %v1121
    %v1309 = vunpack.c.l.b16 %v1122
    %v1310 = vunpack.c.h.b16 %v1122
    %v1311 = vunpack.c.l.b16 %v1123
    %v1312 = vunpack.c.h.b16 %v1123
    %v1313 = vunpack.c.l.b16 %v1124
    %v1314 = vunpack.c.h.b16 %v1124
    %v1315 = vunpack.c.l.b16 %v1125
    %v1316 = vunpack.c.h.b16 %v1125
    %v1317 = vunpack.c.l.b16 %v1126
    %v1318 = vunpack.c.h.b16 %v1126
    %v1319 = vunpack.c.l.b16 %v1127
    %v1320 = vunpack.c.h.b16 %v1127
    %v1321 = vunpack.c.l.b16 %v1128
    %v1322 = vunpack.c.h.b16 %v1128
    %v1323 = vunpack.c.l.b16 %v1129
    %v1324 = vunpack.c.h.b16 %v1129
    %v1325 = vunpack.c.l.b16 %v1130
    %v1326 = vunpack.c.h.b16 %v1130
    %v1327 = vunpack.c.l.b16 %v1131
    %v1328 = vunpack.c.h.b16 %v1131
    %v1329 = vunpack.c.l.b16 %v1132
    %v1330 = vunpack.c.h.b16 %v1132
    %v1331 = vunpack.c.l.b16 %v1133
    %v1332 = vunpack.c.h.b16 %v1133
    %v1333 = vunpack.c.l.b16 %v1134
    %v1334 = vunpack.c.h.b16 %v1134
    %v1335 = vunpack.c.l.b16 %v1135
    %v1336 = vunpack.c.h.b16 %v1135
    %v1337 = vunpack.c.l.b16 %v1136
    %v1338 = vunpack.c.h.b16 %v1136
    %v1339 = vunpack.c.l.b16 %v1137
    %v1340 = vunpack.c.h.b16 %v1137
    %v1341 = vunpack.c.l.b16 %v1138
    %v1342 = vunpack.c.h.b16 %v1138
    %v1343 = vunpack.c.l.b16 %v1139
    %v1344 = vunpack.c.h.b16 %v1139
    %v1345 = vunpack.c.l.b16 %v1140
    %v1346 = vunpack.c.h.b16 %v1140
    %v1347 = vunpack.c.l.b16 %v1141
    %v1348 = vunpack.c.h.b16 %v1141
    %v1349 = vunpack.c.l.b16 %v1142
    %v1350 = vunpack.c.h.b16 %v1142
    %v1351 = vunpack.c.l.b16 %v1143
    %v1352 = vunpack.c.h.b16 %v1143
    %v1353 = vunpack.c.l.b16 %v1144
    %v1354 = vunpack.c.h.b16 %v1144
    %v1355 = vpack.c.b16 %v1235, %v1227
    %v1356 = vpack.c.b16 %v1236, %v1228
    %v1357 = vpack.c.b16 %v1237, %v1229
    %v1358 = vpack.c.b16 %v1238, %v1230
    %v1359 = vpack.c.b16 %v1239, %v1231
    %v1360 = vpack.c.b16 %v1240, %v1232
    %v1361 = vpack.c.b16 %v1241, %v1233
    %v1362 = vpack.c.b16 %v1242, %v1234
    %v1363 = vpack.c.b16 %v1251, %v1243
    %v1364 = vpack.c.b16 %v1252, %v1244
    %v1365 = vpack.c.b16 %v1253, %v1245
    %v1366 = vpack.c.b16 %v1254, %v1246
    %v1367 = vpack.c.b16 %v1255, %v1247
    %v1368 = vpack.c.b16 %v1256, %v1248
    %v1369 = vpack.c.b16 %v1257, %v1249
    %v1370 = vpack.c.b16 %v1258, %v1250
    %v1371 = vpack.c.b16 %v1267, %v1259
    %v1372 = vpack.c.b16 %v1268, %v1260
    %v1373 = vpack.c.b16 %v1269, %v1261
    %v1374 = vpack.c.b16 %v1270, %v1262
    %v1375 = vpack.c.b16 %v1271, %v1263
    %v1376 = vpack.c.b16 %v1272, %v1264
    %v1377 = vpack.c.b16 %v1273, %v1265
    %v1378 = vpack.c.b16 %v1274, %v1266
    %v1379 = vpack.c.b16 %v1283, %v1275
    %v1380 = vpack.c.b16 %v1284, %v1276
    %v1381 = vpack.c.b16 %v1285, %v1277
    %v1382 = vpack.c.b16 %v1286, %v1278
    %v1383 = vpack.c.b16 %v1287, %v1279
    %v1384 = vpack.c.b16 %v1288, %v1280
    %v1385 = vpack.c.b16 %v1289, %v1281
    %v1386 = vpack.c.b16 %v1290, %v1282
    %v1387 = vpack.c.b16 %v1299, %v1291
    %v1388 = vpack.c.b16 %v1300, %v1292
    %v1389 = vpack.c.b16 %v1301, %v1293
    %v1390 = vpack.c.b16 %v1302, %v1294
    %v1391 = vpack.c.b16 %v1303, %v1295
    %v1392 = vpack.c.b16 %v1304, %v1296
    %v1393 = vpack.c.b16 %v1305, %v1297
    %v1394 = vpack.c.b16 %v1306, %v1298
    %v1395 = vpack.c.b16 %v1315, %v1307
    %v1396 = vpack.c.b16 %v1316, %v1308
    %v1397 = vpack.c.b16 %v1317, %v1309
    %v1398 = vpack.c.b16 %v1318, %v1310
    %v1399 = vpack.c.b16 %v1319, %v1311
    %v1400 = vpack.c.b16 %v1320, %v1312
    %v1401 = vpack.c.b16 %v1321, %v1313
    %v1402 = vpack.c.b16 %v1322, %v1314
    %v1403 = vpack.c.b16 %v1331, %v1323
    %v1404 = vpack.c.b16 %v1332, %v1324
    %v1405 = vpack.c.b16 %v1333, %v1325
    %v1406 = vpack.c.b16 %v1334, %v1326
    %v1407 = vpack.c.b16 %v1335, %v1327
    %v1408 = vpack.c.b16 %v1336, %v1328
    %v1409 = vpack.c.b16 %v1337, %v1329
    %v1410 = vpack.c.b16 %v1338, %v1330
    %v1411 = vpack.c.b16 %v1347, %v1339
    %v1412 = vpack.c.b16 %v1348, %v1340
    %v1413 = vpack.c.b16 %v1349, %v1341
    %v1414 = vpack.c.b16 %v1350, %v1342
    %v1415 = vpack.c.b16 %v1351, %v1343
    %v1416 = vpack.c.b16 %v1352, %v1344
    %v1417 = vpack.c.b16 %v1353, %v1345
    %v1418 = vpack.c.b16 %v1354, %v1346
    %1483 = vmatpush.bf16.msra.mxu0 %v1411
    %1484 = vmatpush.bf16.msra.mxu0 %v1403
    %1485 = vmatpush.bf16.msra.mxu0 %v1395
    %1486 = vmatpush.bf16.msra.mxu0 %v1387
    %1487 = vmatpush.bf16.msra.mxu0 %v1379
    %1488 = vmatpush.bf16.msra.mxu0 %v1371
    %1489 = vmatpush.bf16.msra.mxu0 %v1363
    %1490 = vmatpush.bf16.msra.mxu0 %v1355
    %1491 = vmatmul.bf16.gmra.mxu0 %v1080
    %v1492 = vpop.f32.mrf.mxu0
    %v1493 = vadd.f32 %v1147, %v1492
    %v1494 = vpop.f32.mrf.mxu0
    %1495 = vdwg.mxu0
    %1496 = vmatpush.bf16.msra.mxu0 %v1412
    %1497 = vmatpush.bf16.msra.mxu0 %v1404
    %1498 = vmatpush.bf16.msra.mxu0 %v1396
    %1499 = vmatpush.bf16.msra.mxu0 %v1388
    %1500 = vmatpush.bf16.msra.mxu0 %v1380
    %1501 = vmatpush.bf16.msra.mxu0 %v1372
    %1502 = vmatpush.bf16.msra.mxu0 %v1364
    %1503 = vmatpush.bf16.msra.mxu0 %v1356
    %1504 = vmatmul.bf16.gmra.mxu0 %v1080
    %v1505 = vpop.f32.mrf.mxu0
    %v1506 = vadd.f32 %v1148, %v1505
    %v1507 = vpop.f32.mrf.mxu0
    %1508 = vdwg.mxu0
    %1509 = vmatpush.bf16.msra.mxu0 %v1413
    %1510 = vmatpush.bf16.msra.mxu0 %v1405
    %1511 = vmatpush.bf16.msra.mxu0 %v1397
    %1512 = vmatpush.bf16.msra.mxu0 %v1389
    %1513 = vmatpush.bf16.msra.mxu0 %v1381
    %1514 = vmatpush.bf16.msra.mxu0 %v1373
    %1515 = vmatpush.bf16.msra.mxu0 %v1365
    %1516 = vmatpush.bf16.msra.mxu0 %v1357
    %1517 = vmatmul.bf16.gmra.mxu0 %v1080
    %v1518 = vpop.f32.mrf.mxu0
    %v1519 = vadd.f32 %v1149, %v1518
    %v1520 = vpop.f32.mrf.mxu0
    %1521 = vdwg.mxu0
    %1522 = vmatpush.bf16.msra.mxu0 %v1414
    %1523 = vmatpush.bf16.msra.mxu0 %v1406
    %1524 = vmatpush.bf16.msra.mxu0 %v1398
    %1525 = vmatpush.bf16.msra.mxu0 %v1390
    %1526 = vmatpush.bf16.msra.mxu0 %v1382
    %1527 = vmatpush.bf16.msra.mxu0 %v1374
    %1528 = vmatpush.bf16.msra.mxu0 %v1366
    %1529 = vmatpush.bf16.msra.mxu0 %v1358
    %1530 = vmatmul.bf16.gmra.mxu0 %v1080
    %v1531 = vpop.f32.mrf.mxu0
    %v1532 = vadd.f32 %v1150, %v1531
    %v1533 = vpop.f32.mrf.mxu0
    %1534 = vdwg.mxu0
    %1535 = vmatpush.bf16.msra.mxu0 %v1415
    %1536 = vmatpush.bf16.msra.mxu0 %v1407
    %1537 = vmatpush.bf16.msra.mxu0 %v1399
    %1538 = vmatpush.bf16.msra.mxu0 %v1391
    %1539 = vmatpush.bf16.msra.mxu0 %v1383
    %1540 = vmatpush.bf16.msra.mxu0 %v1375
    %1541 = vmatpush.bf16.msra.mxu0 %v1367
    %1542 = vmatpush.bf16.msra.mxu0 %v1359
    %1543 = vmatmul.bf16.gmra.mxu0 %v1080
    %v1544 = vpop.f32.mrf.mxu0
    %v1545 = vadd.f32 %v1151, %v1544
    %v1546 = vpop.f32.mrf.mxu0
    %1547 = vdwg.mxu0
    %1548 = vmatpush.bf16.msra.mxu0 %v1416
    %1549 = vmatpush.bf16.msra.mxu0 %v1408
    %1550 = vmatpush.bf16.msra.mxu0 %v1400
    %1551 = vmatpush.bf16.msra.mxu0 %v1392
    %1552 = vmatpush.bf16.msra.mxu0 %v1384
    %1553 = vmatpush.bf16.msra.mxu0 %v1376
    %1554 = vmatpush.bf16.msra.mxu0 %v1368
    %1555 = vmatpush.bf16.msra.mxu0 %v1360
    %1556 = vmatmul.bf16.gmra.mxu0 %v1080
    %v1557 = vpop.f32.mrf.mxu0
    %v1558 = vadd.f32 %v1152, %v1557
    %v1559 = vpop.f32.mrf.mxu0
    %1560 = vdwg.mxu0
    %1561 = vmatpush.bf16.msra.mxu0 %v1417
    %1562 = vmatpush.bf16.msra.mxu0 %v1409
    %1563 = vmatpush.bf16.msra.mxu0 %v1401
    %1564 = vmatpush.bf16.msra.mxu0 %v1393
    %1565 = vmatpush.bf16.msra.mxu0 %v1385
    %1566 = vmatpush.bf16.msra.mxu0 %v1377
    %1567 = vmatpush.bf16.msra.mxu0 %v1369
    %1568 = vmatpush.bf16.msra.mxu0 %v1361
    %1569 = vmatmul.bf16.gmra.mxu0 %v1080
    %v1570 = vpop.f32.mrf.mxu0
    %v1571 = vadd.f32 %v1153, %v1570
    %v1572 = vpop.f32.mrf.mxu0
    %1573 = vdwg.mxu0
    %1574 = vmatpush.bf16.msra.mxu0 %v1418
    %1575 = vmatpush.bf16.msra.mxu0 %v1410
    %1576 = vmatpush.bf16.msra.mxu0 %v1402
    %1577 = vmatpush.bf16.msra.mxu0 %v1394
    %1578 = vmatpush.bf16.msra.mxu0 %v1386
    %1579 = vmatpush.bf16.msra.mxu0 %v1378
    %1580 = vmatpush.bf16.msra.mxu0 %v1370
    %1581 = vmatpush.bf16.msra.mxu0 %v1362
    %1582 = vmatmul.bf16.gmra.mxu0 %v1080
    %v1583 = vpop.f32.mrf.mxu0
    %v1584 = vadd.f32 %v1154, %v1583
    %v1585 = vpop.f32.mrf.mxu0
    %1586 = vdwg.mxu0
    %v1587 = vmul.f32 %v118, 2.0
    %v1588 = vmul.f32 %v1587, 3.218876
    %v1589 = vmul.f32 %v1588, 1.442695
    %v1590 = vpow.pop %v1589
    %v1591 = vsub.f32 %v1590, 1.0
    %v1592 = vrcp.pop 6.437752
    %v1593 = vmul.f32 6.437752, %v1592
    %v1594 = vsub.f32 1.0, %v1593
    %v1595 = vmul.f32 %v1592, %v1594
    %v1596 = vadd.f32 %v1592, %v1595
    %vm1597 = vweird.f32 %v1592
    %v1598 = vsel %vm1597, %v1592, %v1596
    %v1599 = vmul.f32 %v1591, %v1598
    %v1600 = vrsqrt.pop %v1599
    %v1601 = vmul.f32 %v1600, %v1599
    %v1602 = vmul.f32 %v1601, %v1600
    %v1603 = vmul.f32 0.5, %v1602
    %v1604 = vsub.f32 1.5, %v1603
    %v1605 = vmul.f32 %v1600, %v1604
    %vm1606 = vweird.f32 %v1599
    %vm1607 = vweird.f32 %v1600
    %vm1608 = vmor %vm1606, %vm1607
    %v1609 = vsel %vm1608, %v1600, %v1605
    %1611 = vset.pattern.permute.xlu0 0
    %1612 = vperm.xlu0 %1611, %v1609
    %v1613 = vpop.permute.xlu0 %1612
    %v1615 = vmul.f32 %v1493, %v1613
    %v1616 = vmul.f32 %v1506, %v1613
    %v1617 = vmul.f32 %v1519, %v1613
    %v1618 = vmul.f32 %v1532, %v1613
    %v1619 = vmul.f32 %v1545, %v1613
    %v1620 = vmul.f32 %v1558, %v1613
    %v1621 = vmul.f32 %v1571, %v1613
    %v1622 = vmul.f32 %v1584, %v1613
    %v1631 = vrot.slane %v1616, 6
    %v1632 = vrot.slane %v1617, 4
    %v1633 = vrot.slane %v1618, 2
    %v1634 = vrot.slane %v1620, 6
    %v1635 = vrot.slane %v1621, 4
    %v1636 = vrot.slane %v1622, 2
    %v1637 = vsel %vm300, %v1615, %v1631
    %vm1638 = vcmask 1045508
    %v1639 = vsel %vm1638, %v1632, %v1633
    %vm1640 = vcmask 1043456
    %v1641 = vsel %vm1640, %v1637, %v1639
    %v1642 = vsel %vm300, %v1619, %v1634
    %v1643 = vsel %vm1638, %v1635, %v1636
    %v1644 = vsel %vm1640, %v1642, %v1643
    %1647 = vst [vmem:[#allocation13] sm:$0xff] %v1641
    %1648 = vst [vmem:[#allocation13 + $0x8] sm:$0xff] %v1644
    // Predicated region
    $region58: #{tpu_custom_call.1} parent=1 // pred_check
      _
    $region59: #{tpu_custom_call.1} parent=1 // pred_check_branch
      %1650 = sbr.rel (0) target = $region61
    $region60: #{tpu_custom_call.1} parent=1 // pred_region
      %1652 = vsyncadd [#allocation6], 0
      %s1654 = sshll.u32 [#allocation13], 4
      %s1655 = int_to_ptr.vmem [resolvable:$true] %s1654
      %s1656 = sshll.u32 %s10, 4
      %s1657 = int_to_ptr.hbm [resolvable:$true] %s1656
      %1659 = dma.vmem_to_hbm [thread:$0]  %s1655, 256, %s1657, [#allocation6]
    $region61: #{tpu_custom_call.1} parent=1 // pred_fallthru
      _
    // Predicated region
    $region62: #{tpu_custom_call.1} parent=1 // pred_check
      _
    $region63: #{tpu_custom_call.1} parent=1 // pred_check_branch
      %1661 = sbr.rel (0) target = $region65
    $region64: #{tpu_custom_call.1} parent=1 // pred_region
      %1663 = dma.done [#allocation6], 256
    $region65: #{tpu_custom_call.1} parent=1 // pred_fallthru
      _
    %1664 = vsyncpa [#allocation5], 1
    %1665 = vsyncpa [#allocation8], 1
    %1666 = vsyncpa [#allocation11], 1
    %1667 = vsyncpa [#allocation6], 1

</llo_original>
